<compile_context>
chip_gen: v7x
topology: tpu7x:2x2x1
jax: 0.10.0
libtpu: 0.0.40
codegen_flags: <defaults>
</compile_context>

<pallas_src>
import numpy as np
import jax
import jax.numpy as jnp
from jax.experimental import pallas as pl
from jax.experimental.pallas import tpu as pltpu

LOG2 = float(np.log(2.0))


# ----------------------------------------------------------------------------
# Fused ResidueAttention kernel (one node-tile per grid step)
# ----------------------------------------------------------------------------
def residue_attention_kernel(hv_ref, cat_ref, wq_ref, wkv_ref, bd_ref, wo_ref, o_ref):
    f32 = jnp.float32
    bf16 = jnp.bfloat16

    TN, H = hv_ref.shape
    twoH = 2 * H
    K = cat_ref.shape[1] // twoH

    # ---- Q projection: bf16 operands, f32 accumulation on the MXU ----
    q = jnp.dot(hv_ref[...], wq_ref[...], preferred_element_type=f32)      # (TN, H) f32

    def slot(k):
        """Projected key/value + per-head logit for neighbor slot k (static k)."""
        cat_k = cat_ref[:, k * twoH:(k + 1) * twoH]                        # (TN, 2H) bf16
        kv_k = jnp.dot(cat_k, wkv_ref[...], preferred_element_type=f32)    # (TN, 2H) f32
        ke_k = kv_k[:, :H]
        ve_k = kv_k[:, H:]          # 1/sqrt(head_dim) already folded into W_V
        # per-head logit replicated across the head's d lanes (block-diag 0/1 matmul)
        logit_k = jnp.dot(q * ke_k, bd_ref[...], preferred_element_type=f32)   # (TN, H)
        return logit_k, ve_k

    # ---- online softmax over the K neighbor slots (scatter_softmax over `row`) ----
    # Live state is only (TN, H): running max m, denominator l, weighted-V acc.
    m, ve0 = slot(0)                 # p_0 = exp(0) = 1 exactly
    l = jnp.ones_like(m)
    acc = ve0
    for k in range(1, K):            # K is small & static -> unrolled
        logit_k, ve_k = slot(k)
        m_new = jnp.maximum(m, logit_k)
        corr = jnp.exp(m - m_new)
        p = jnp.exp(logit_k - m_new)
        l = corr * l + p
        acc = corr * acc + p * ve_k
        m = m_new

    aggr = acc / l                   # exact normalization (denominator >= 1)

    # ---- ShiftedSoftplus(x) = softplus(x) - log 2 (numerically stable, f32) ----
    act = jnp.maximum(aggr, 0.0) + jnp.log(1.0 + jnp.exp(-jnp.abs(aggr))) - LOG2

    # ---- output projection W_O ----
    o_ref[...] = jnp.dot(act.astype(bf16), wo_ref[...], preferred_element_type=f32)


# ----------------------------------------------------------------------------
# Wrapper: index plumbing + pallas_call
# ----------------------------------------------------------------------------
def _pick_tile(n, want):
    """Largest multiple-of-16 divisor of n that is <= want (falls back to n)."""
    t = (min(want, n) // 16) * 16
    while t >= 16:
        if n % t == 0:
            return t
        t -= 16
    return n


def residue_attention(h_v, h_e, edge_index, weights, *, num_heads, tile_n=512):
    N, H = h_v.shape
    E = h_e.shape[0]
    assert E % N == 0, "dense node-major layout requires E == N * K"
    K = E // N
    d = H // num_heads
    w_q, w_k, w_v, w_o = weights                      # PyTorch (out, in) layout, no bias

    # Dense node-major layout required: row == repeat(arange(N), K).
    row, col = edge_index[0], edge_index[1]
    try:
        row_np = np.asarray(row)                      # fails under jit tracing -> skip check
    except Exception:
        row_np = None
    if row_np is not None:
        expected = np.repeat(np.arange(N), K)
        if not np.array_equal(row_np, expected):
            raise ValueError(
                "residue_attention requires a dense node-major edge_index "
                "(edge_index[0] == repeat(arange(N), K))")

    bf16 = jnp.bfloat16

    # Neighbor gather + concat -> node-major lane-dense (N, K*2H) bf16 slab.
    hv_nbr = jnp.take(h_v, col, axis=0)                               # (E, H)
    cat = jnp.concatenate([h_e, hv_nbr], axis=-1)                     # (E, 2H)
    cat = cat.reshape(N, K * 2 * H).astype(bf16)                      # (N, K*2H)

    # Tile over node rows; keep >=2 tiles when possible so dual-TC parts (v7x)
    # can shard the "parallel" grid axis across both TensorCores.
    want = min(tile_n, N)
    if N // want < 2 and N >= 32:
        want = max(16, N // 2)
    tile_n = _pick_tile(N, want)
    assert N % tile_n == 0

    # Merged [W_K^T | (W_V^T / sqrt(d))]: one K/V projection matmul per slot.
    wq_t = jnp.asarray(w_q).T.astype(bf16)                            # (H, H)
    wkv_t = jnp.concatenate(
        [jnp.asarray(w_k).T, jnp.asarray(w_v).T * (1.0 / float(np.sqrt(d)))],
        axis=-1).astype(bf16)                                         # (2H, 2H)
    wo_t = jnp.asarray(w_o).T.astype(bf16)                            # (H, H)

    # Block-diagonal 0/1 matrix: per-head lane-sum with the result replicated
    # across each head's d lanes (fuses the old hsum + bh helper matmuls).
    bd = jnp.asarray(np.kron(np.eye(num_heads, dtype=np.float32),
                             np.ones((d, d), dtype=np.float32)))      # (H, H)

    grid = (N // tile_n,)
    return pl.pallas_call(
        residue_attention_kernel,
        out_shape=jax.ShapeDtypeStruct((N, H), jnp.float32),
        grid=grid,
        in_specs=[
            pl.BlockSpec((tile_n, H), lambda i: (i, 0)),              # h_V tile (bf16)
            pl.BlockSpec((tile_n, K * 2 * H), lambda i: (i, 0)),      # [h_E | h_V[col]] slab
            pl.BlockSpec((H, H), lambda i: (0, 0)),                   # W_Q^T (pinned)
            pl.BlockSpec((2 * H, 2 * H), lambda i: (0, 0)),           # [W_K^T | W_V^T/sqrt d]
            pl.BlockSpec((H, H), lambda i: (0, 0)),                   # block-diag head-sum
            pl.BlockSpec((H, H), lambda i: (0, 0)),                   # W_O^T
        ],
        out_specs=pl.BlockSpec((tile_n, H), lambda i: (i, 0)),
        compiler_params=pltpu.CompilerParams(
            dimension_semantics=("parallel",),      # megacore / dual-TC shardable
            vmem_limit_bytes=32 * 1024 * 1024,      # footprint ~2-3 MiB even at tile_n=1024
        ),
    )(h_v.astype(bf16), cat, wq_t, wkv_t, bd, wo_t)


# ----------------------------------------------------------------------------
# Pure-JAX reference (same bf16-operand / f32-accumulate precision as the kernel)
# ----------------------------------------------------------------------------
def residue_attention_ref(h_v, h_e, edge_index, weights, *, num_heads):
    N, H = h_v.shape
    E = h_e.shape[0]
    K = E // N
    d = H // num_heads
    w_q, w_k, w_v, w_o = weights
    row, col = edge_index

    def mm(a, w):
        return jnp.dot(a.astype(jnp.bfloat16), w.T.astype(jnp.bfloat16),
                       preferred_element_type=jnp.float32)

    q = mm(h_v, w_q).reshape(N, num_heads, d)
    cat = jnp.concatenate([h_e, h_v[col]], axis=-1)
    k = mm(cat, w_k).reshape(E, num_heads, d)
    v = mm(cat, w_v).reshape(E, num_heads, d)
    logits = jnp.sum(q[row] * k, axis=-1).reshape(N, K, num_heads)
    alpha = jax.nn.softmax(logits, axis=1) / np.sqrt(d)
    msg = alpha[..., None] * v.reshape(N, K, num_heads, d)
    aggr = jnp.sum(msg, axis=1).reshape(N, H)
    act = jax.nn.softplus(aggr) - LOG2
    return mm(act, w_o)


# ----------------------------------------------------------------------------
# Demo
# ----------------------------------------------------------------------------
if __name__ == "__main__":
    N, H, HEADS, K = 64, 32, 4, 8          # num_hidden=32, num_heads=4, 8 neighbors
    E = N * K

    key = jax.random.PRNGKey(0)
    k1, k2, k3, k4, k5, k6 = jax.random.split(key, 6)
    h_v = jax.random.normal(k1, (N, H), jnp.float32)
    h_e = jax.random.normal(k2, (E, H), jnp.float32)

    # dense node-major edge_index: node n attends to nodes (n+1 .. n+K) mod N
    row = jnp.repeat(jnp.arange(N, dtype=jnp.int32), K)
    col = ((jnp.arange(N, dtype=jnp.int32)[:, None]
            + jnp.arange(1, K + 1, dtype=jnp.int32)[None, :]) % N).reshape(-1)
    edge_index = jnp.stack([row, col])

    def init_lin(kk, out_d, in_d):
        return (jax.random.normal(kk, (out_d, in_d), jnp.float32)
                / np.sqrt(in_d)).astype(jnp.float32)

    weights = (init_lin(k3, H, H),          # W_Q  (H <- H)
               init_lin(k4, H, 2 * H),      # W_K  (H <- 2H)
               init_lin(k5, H, 2 * H),      # W_V  (H <- 2H)
               init_lin(k6, H, H))          # W_O  (H <- H)

    out = residue_attention(h_v, h_e, edge_index, weights, num_heads=HEADS)
    out = jax.block_until_ready(out)

    assert out.shape == (N, H)
    assert bool(jnp.all(jnp.isfinite(out)))

    ref = residue_attention_ref(h_v, h_e, edge_index, weights, num_heads=HEADS)
    max_err = float(jnp.max(jnp.abs(out - ref)))
    tol = 1e-2 + 1e-2 * float(jnp.max(jnp.abs(ref)))
    assert max_err < tol, f"kernel/reference mismatch: max_err={max_err}"

    print("KERNEL_OK")
</pallas_src>

<mosaic_0001>
module attributes {stable_mosaic.version = 11 : i64} {
  func.func @residue_attention_kernel(%arg0: i32, %arg1: memref<32x32xbf16, #tpu.memory_space<vmem>>, %arg2: memref<32x512xbf16, #tpu.memory_space<vmem>>, %arg3: memref<32x32xbf16, #tpu.memory_space<vmem>>, %arg4: memref<64x64xbf16, #tpu.memory_space<vmem>>, %arg5: memref<32x32xf32, #tpu.memory_space<vmem>>, %arg6: memref<32x32xbf16, #tpu.memory_space<vmem>>, %arg7: memref<32x32xf32, #tpu.memory_space<vmem>>) attributes {dimension_semantics = [#tpu.dimension_semantics<parallel>], iteration_bounds = array<i64: 2>, scalar_prefetch = 0 : i64, scratch_operands = 0 : i64, tpu.core_type = #tpu.core_type<tc>, window_params = [{transform_indices = @transform_0, window_bounds = array<i64: 32, 32>}, {transform_indices = @transform_1, window_bounds = array<i64: 32, 512>}, {pipeline_mode = #tpu.pipeline_mode<synchronous>, transform_indices = @transform_2, window_bounds = array<i64: 32, 32>}, {pipeline_mode = #tpu.pipeline_mode<synchronous>, transform_indices = @transform_3, window_bounds = array<i64: 64, 64>}, {pipeline_mode = #tpu.pipeline_mode<synchronous>, transform_indices = @transform_4, window_bounds = array<i64: 32, 32>}, {pipeline_mode = #tpu.pipeline_mode<synchronous>, transform_indices = @transform_5, window_bounds = array<i64: 32, 32>}, {transform_indices = @transform_6, window_bounds = array<i64: 32, 32>}]} {
    %c0 = arith.constant 0 : index
    %c0_0 = arith.constant 0 : index
    %0 = vector.load %arg1[%c0, %c0_0] : memref<32x32xbf16, #tpu.memory_space<vmem>>, vector<32x32xbf16>
    %c0_1 = arith.constant 0 : index
    %c0_2 = arith.constant 0 : index
    %1 = vector.load %arg3[%c0_1, %c0_2] : memref<32x32xbf16, #tpu.memory_space<vmem>>, vector<32x32xbf16>
    %cst = arith.constant dense<0.000000e+00> : vector<32x32xf32>
    %2 = tpu.matmul %0, %1, %cst {dimension_numbers = #tpu.dot_dimension_numbers<[1], [0], [0], [1], [0, 0, 1, 1], [], []>} : vector<32x32xbf16>, vector<32x32xbf16>, vector<32x32xf32> -> vector<32x32xf32>
    %c0_3 = arith.constant 0 : index
    %c0_4 = arith.constant 0 : index
    %3 = vector.load %arg2[%c0_3, %c0_4] : memref<32x512xbf16, #tpu.memory_space<vmem>>, vector<32x64xbf16>
    %c0_5 = arith.constant 0 : index
    %c0_6 = arith.constant 0 : index
    %4 = vector.load %arg4[%c0_5, %c0_6] : memref<64x64xbf16, #tpu.memory_space<vmem>>, vector<64x64xbf16>
    %cst_7 = arith.constant dense<0.000000e+00> : vector<32x64xf32>
    %5 = tpu.matmul %3, %4, %cst_7 {dimension_numbers = #tpu.dot_dimension_numbers<[1], [0], [0], [1], [0, 0, 1, 1], [], []>} : vector<32x64xbf16>, vector<64x64xbf16>, vector<32x64xf32> -> vector<32x64xf32>
    %6 = vector.extract_strided_slice %5 {offsets = [0, 0], sizes = [32, 32], strides = [1, 1]} : vector<32x64xf32> to vector<32x32xf32>
    %7 = vector.extract_strided_slice %5 {offsets = [0, 32], sizes = [32, 32], strides = [1, 1]} : vector<32x64xf32> to vector<32x32xf32>
    %8 = arith.mulf %2, %6 : vector<32x32xf32>
    %c0_8 = arith.constant 0 : index
    %c0_9 = arith.constant 0 : index
    %9 = vector.load %arg5[%c0_8, %c0_9] : memref<32x32xf32, #tpu.memory_space<vmem>>, vector<32x32xf32>
    %cst_10 = arith.constant dense<0.000000e+00> : vector<32x32xf32>
    %10 = tpu.matmul %8, %9, %cst_10 {dimension_numbers = #tpu.dot_dimension_numbers<[1], [0], [0], [1], [0, 0, 1, 1], [], []>} : vector<32x32xf32>, vector<32x32xf32>, vector<32x32xf32> -> vector<32x32xf32>
    %cst_11 = arith.constant 1.000000e+00 : f32
    %11 = vector.broadcast %cst_11 : f32 to vector<32x32xf32>
    %c0_12 = arith.constant 0 : index
    %c64 = arith.constant 64 : index
    %12 = vector.load %arg2[%c0_12, %c64] : memref<32x512xbf16, #tpu.memory_space<vmem>>, vector<32x64xbf16>
    %c0_13 = arith.constant 0 : index
    %c0_14 = arith.constant 0 : index
    %13 = vector.load %arg4[%c0_13, %c0_14] : memref<64x64xbf16, #tpu.memory_space<vmem>>, vector<64x64xbf16>
    %cst_15 = arith.constant dense<0.000000e+00> : vector<32x64xf32>
    %14 = tpu.matmul %12, %13, %cst_15 {dimension_numbers = #tpu.dot_dimension_numbers<[1], [0], [0], [1], [0, 0, 1, 1], [], []>} : vector<32x64xbf16>, vector<64x64xbf16>, vector<32x64xf32> -> vector<32x64xf32>
    %15 = vector.extract_strided_slice %14 {offsets = [0, 0], sizes = [32, 32], strides = [1, 1]} : vector<32x64xf32> to vector<32x32xf32>
    %16 = vector.extract_strided_slice %14 {offsets = [0, 32], sizes = [32, 32], strides = [1, 1]} : vector<32x64xf32> to vector<32x32xf32>
    %17 = arith.mulf %2, %15 : vector<32x32xf32>
    %c0_16 = arith.constant 0 : index
    %c0_17 = arith.constant 0 : index
    %18 = vector.load %arg5[%c0_16, %c0_17] : memref<32x32xf32, #tpu.memory_space<vmem>>, vector<32x32xf32>
    %cst_18 = arith.constant dense<0.000000e+00> : vector<32x32xf32>
    %19 = tpu.matmul %17, %18, %cst_18 {dimension_numbers = #tpu.dot_dimension_numbers<[1], [0], [0], [1], [0, 0, 1, 1], [], []>} : vector<32x32xf32>, vector<32x32xf32>, vector<32x32xf32> -> vector<32x32xf32>
    %20 = arith.maximumf %10, %19 : vector<32x32xf32>
    %21 = arith.subf %10, %20 : vector<32x32xf32>
    %22 = math.exp %21 : vector<32x32xf32>
    %23 = arith.subf %19, %20 : vector<32x32xf32>
    %24 = math.exp %23 : vector<32x32xf32>
    %25 = arith.mulf %22, %11 : vector<32x32xf32>
    %26 = arith.addf %25, %24 : vector<32x32xf32>
    %27 = arith.mulf %22, %7 : vector<32x32xf32>
    %28 = arith.mulf %24, %16 : vector<32x32xf32>
    %29 = arith.addf %27, %28 : vector<32x32xf32>
    %c0_19 = arith.constant 0 : index
    %c128 = arith.constant 128 : index
    %30 = vector.load %arg2[%c0_19, %c128] : memref<32x512xbf16, #tpu.memory_space<vmem>>, vector<32x64xbf16>
    %c0_20 = arith.constant 0 : index
    %c0_21 = arith.constant 0 : index
    %31 = vector.load %arg4[%c0_20, %c0_21] : memref<64x64xbf16, #tpu.memory_space<vmem>>, vector<64x64xbf16>
    %cst_22 = arith.constant dense<0.000000e+00> : vector<32x64xf32>
    %32 = tpu.matmul %30, %31, %cst_22 {dimension_numbers = #tpu.dot_dimension_numbers<[1], [0], [0], [1], [0, 0, 1, 1], [], []>} : vector<32x64xbf16>, vector<64x64xbf16>, vector<32x64xf32> -> vector<32x64xf32>
    %33 = vector.extract_strided_slice %32 {offsets = [0, 0], sizes = [32, 32], strides = [1, 1]} : vector<32x64xf32> to vector<32x32xf32>
    %34 = vector.extract_strided_slice %32 {offsets = [0, 32], sizes = [32, 32], strides = [1, 1]} : vector<32x64xf32> to vector<32x32xf32>
    %35 = arith.mulf %2, %33 : vector<32x32xf32>
    %c0_23 = arith.constant 0 : index
    %c0_24 = arith.constant 0 : index
    %36 = vector.load %arg5[%c0_23, %c0_24] : memref<32x32xf32, #tpu.memory_space<vmem>>, vector<32x32xf32>
    %cst_25 = arith.constant dense<0.000000e+00> : vector<32x32xf32>
    %37 = tpu.matmul %35, %36, %cst_25 {dimension_numbers = #tpu.dot_dimension_numbers<[1], [0], [0], [1], [0, 0, 1, 1], [], []>} : vector<32x32xf32>, vector<32x32xf32>, vector<32x32xf32> -> vector<32x32xf32>
    %38 = arith.maximumf %20, %37 : vector<32x32xf32>
    %39 = arith.subf %20, %38 : vector<32x32xf32>
    %40 = math.exp %39 : vector<32x32xf32>
    %41 = arith.subf %37, %38 : vector<32x32xf32>
    %42 = math.exp %41 : vector<32x32xf32>
    %43 = arith.mulf %40, %26 : vector<32x32xf32>
    %44 = arith.addf %43, %42 : vector<32x32xf32>
    %45 = arith.mulf %40, %29 : vector<32x32xf32>
    %46 = arith.mulf %42, %34 : vector<32x32xf32>
    %47 = arith.addf %45, %46 : vector<32x32xf32>
    %c0_26 = arith.constant 0 : index
    %c192 = arith.constant 192 : index
    %48 = vector.load %arg2[%c0_26, %c192] : memref<32x512xbf16, #tpu.memory_space<vmem>>, vector<32x64xbf16>
    %c0_27 = arith.constant 0 : index
    %c0_28 = arith.constant 0 : index
    %49 = vector.load %arg4[%c0_27, %c0_28] : memref<64x64xbf16, #tpu.memory_space<vmem>>, vector<64x64xbf16>
    %cst_29 = arith.constant dense<0.000000e+00> : vector<32x64xf32>
    %50 = tpu.matmul %48, %49, %cst_29 {dimension_numbers = #tpu.dot_dimension_numbers<[1], [0], [0], [1], [0, 0, 1, 1], [], []>} : vector<32x64xbf16>, vector<64x64xbf16>, vector<32x64xf32> -> vector<32x64xf32>
    %51 = vector.extract_strided_slice %50 {offsets = [0, 0], sizes = [32, 32], strides = [1, 1]} : vector<32x64xf32> to vector<32x32xf32>
    %52 = vector.extract_strided_slice %50 {offsets = [0, 32], sizes = [32, 32], strides = [1, 1]} : vector<32x64xf32> to vector<32x32xf32>
    %53 = arith.mulf %2, %51 : vector<32x32xf32>
    %c0_30 = arith.constant 0 : index
    %c0_31 = arith.constant 0 : index
    %54 = vector.load %arg5[%c0_30, %c0_31] : memref<32x32xf32, #tpu.memory_space<vmem>>, vector<32x32xf32>
    %cst_32 = arith.constant dense<0.000000e+00> : vector<32x32xf32>
    %55 = tpu.matmul %53, %54, %cst_32 {dimension_numbers = #tpu.dot_dimension_numbers<[1], [0], [0], [1], [0, 0, 1, 1], [], []>} : vector<32x32xf32>, vector<32x32xf32>, vector<32x32xf32> -> vector<32x32xf32>
    %56 = arith.maximumf %38, %55 : vector<32x32xf32>
    %57 = arith.subf %38, %56 : vector<32x32xf32>
    %58 = math.exp %57 : vector<32x32xf32>
    %59 = arith.subf %55, %56 : vector<32x32xf32>
    %60 = math.exp %59 : vector<32x32xf32>
    %61 = arith.mulf %58, %44 : vector<32x32xf32>
    %62 = arith.addf %61, %60 : vector<32x32xf32>
    %63 = arith.mulf %58, %47 : vector<32x32xf32>
    %64 = arith.mulf %60, %52 : vector<32x32xf32>
    %65 = arith.addf %63, %64 : vector<32x32xf32>
    %c0_33 = arith.constant 0 : index
    %c256 = arith.constant 256 : index
    %66 = vector.load %arg2[%c0_33, %c256] : memref<32x512xbf16, #tpu.memory_space<vmem>>, vector<32x64xbf16>
    %c0_34 = arith.constant 0 : index
    %c0_35 = arith.constant 0 : index
    %67 = vector.load %arg4[%c0_34, %c0_35] : memref<64x64xbf16, #tpu.memory_space<vmem>>, vector<64x64xbf16>
    %cst_36 = arith.constant dense<0.000000e+00> : vector<32x64xf32>
    %68 = tpu.matmul %66, %67, %cst_36 {dimension_numbers = #tpu.dot_dimension_numbers<[1], [0], [0], [1], [0, 0, 1, 1], [], []>} : vector<32x64xbf16>, vector<64x64xbf16>, vector<32x64xf32> -> vector<32x64xf32>
    %69 = vector.extract_strided_slice %68 {offsets = [0, 0], sizes = [32, 32], strides = [1, 1]} : vector<32x64xf32> to vector<32x32xf32>
    %70 = vector.extract_strided_slice %68 {offsets = [0, 32], sizes = [32, 32], strides = [1, 1]} : vector<32x64xf32> to vector<32x32xf32>
    %71 = arith.mulf %2, %69 : vector<32x32xf32>
    %c0_37 = arith.constant 0 : index
    %c0_38 = arith.constant 0 : index
    %72 = vector.load %arg5[%c0_37, %c0_38] : memref<32x32xf32, #tpu.memory_space<vmem>>, vector<32x32xf32>
    %cst_39 = arith.constant dense<0.000000e+00> : vector<32x32xf32>
    %73 = tpu.matmul %71, %72, %cst_39 {dimension_numbers = #tpu.dot_dimension_numbers<[1], [0], [0], [1], [0, 0, 1, 1], [], []>} : vector<32x32xf32>, vector<32x32xf32>, vector<32x32xf32> -> vector<32x32xf32>
    %74 = arith.maximumf %56, %73 : vector<32x32xf32>
    %75 = arith.subf %56, %74 : vector<32x32xf32>
    %76 = math.exp %75 : vector<32x32xf32>
    %77 = arith.subf %73, %74 : vector<32x32xf32>
    %78 = math.exp %77 : vector<32x32xf32>
    %79 = arith.mulf %76, %62 : vector<32x32xf32>
    %80 = arith.addf %79, %78 : vector<32x32xf32>
    %81 = arith.mulf %76, %65 : vector<32x32xf32>
    %82 = arith.mulf %78, %70 : vector<32x32xf32>
    %83 = arith.addf %81, %82 : vector<32x32xf32>
    %c0_40 = arith.constant 0 : index
    %c320 = arith.constant 320 : index
    %84 = vector.load %arg2[%c0_40, %c320] : memref<32x512xbf16, #tpu.memory_space<vmem>>, vector<32x64xbf16>
    %c0_41 = arith.constant 0 : index
    %c0_42 = arith.constant 0 : index
    %85 = vector.load %arg4[%c0_41, %c0_42] : memref<64x64xbf16, #tpu.memory_space<vmem>>, vector<64x64xbf16>
    %cst_43 = arith.constant dense<0.000000e+00> : vector<32x64xf32>
    %86 = tpu.matmul %84, %85, %cst_43 {dimension_numbers = #tpu.dot_dimension_numbers<[1], [0], [0], [1], [0, 0, 1, 1], [], []>} : vector<32x64xbf16>, vector<64x64xbf16>, vector<32x64xf32> -> vector<32x64xf32>
    %87 = vector.extract_strided_slice %86 {offsets = [0, 0], sizes = [32, 32], strides = [1, 1]} : vector<32x64xf32> to vector<32x32xf32>
    %88 = vector.extract_strided_slice %86 {offsets = [0, 32], sizes = [32, 32], strides = [1, 1]} : vector<32x64xf32> to vector<32x32xf32>
    %89 = arith.mulf %2, %87 : vector<32x32xf32>
    %c0_44 = arith.constant 0 : index
    %c0_45 = arith.constant 0 : index
    %90 = vector.load %arg5[%c0_44, %c0_45] : memref<32x32xf32, #tpu.memory_space<vmem>>, vector<32x32xf32>
    %cst_46 = arith.constant dense<0.000000e+00> : vector<32x32xf32>
    %91 = tpu.matmul %89, %90, %cst_46 {dimension_numbers = #tpu.dot_dimension_numbers<[1], [0], [0], [1], [0, 0, 1, 1], [], []>} : vector<32x32xf32>, vector<32x32xf32>, vector<32x32xf32> -> vector<32x32xf32>
    %92 = arith.maximumf %74, %91 : vector<32x32xf32>
    %93 = arith.subf %74, %92 : vector<32x32xf32>
    %94 = math.exp %93 : vector<32x32xf32>
    %95 = arith.subf %91, %92 : vector<32x32xf32>
    %96 = math.exp %95 : vector<32x32xf32>
    %97 = arith.mulf %94, %80 : vector<32x32xf32>
    %98 = arith.addf %97, %96 : vector<32x32xf32>
    %99 = arith.mulf %94, %83 : vector<32x32xf32>
    %100 = arith.mulf %96, %88 : vector<32x32xf32>
    %101 = arith.addf %99, %100 : vector<32x32xf32>
    %c0_47 = arith.constant 0 : index
    %c384 = arith.constant 384 : index
    %102 = vector.load %arg2[%c0_47, %c384] : memref<32x512xbf16, #tpu.memory_space<vmem>>, vector<32x64xbf16>
    %c0_48 = arith.constant 0 : index
    %c0_49 = arith.constant 0 : index
    %103 = vector.load %arg4[%c0_48, %c0_49] : memref<64x64xbf16, #tpu.memory_space<vmem>>, vector<64x64xbf16>
    %cst_50 = arith.constant dense<0.000000e+00> : vector<32x64xf32>
    %104 = tpu.matmul %102, %103, %cst_50 {dimension_numbers = #tpu.dot_dimension_numbers<[1], [0], [0], [1], [0, 0, 1, 1], [], []>} : vector<32x64xbf16>, vector<64x64xbf16>, vector<32x64xf32> -> vector<32x64xf32>
    %105 = vector.extract_strided_slice %104 {offsets = [0, 0], sizes = [32, 32], strides = [1, 1]} : vector<32x64xf32> to vector<32x32xf32>
    %106 = vector.extract_strided_slice %104 {offsets = [0, 32], sizes = [32, 32], strides = [1, 1]} : vector<32x64xf32> to vector<32x32xf32>
    %107 = arith.mulf %2, %105 : vector<32x32xf32>
    %c0_51 = arith.constant 0 : index
    %c0_52 = arith.constant 0 : index
    %108 = vector.load %arg5[%c0_51, %c0_52] : memref<32x32xf32, #tpu.memory_space<vmem>>, vector<32x32xf32>
    %cst_53 = arith.constant dense<0.000000e+00> : vector<32x32xf32>
    %109 = tpu.matmul %107, %108, %cst_53 {dimension_numbers = #tpu.dot_dimension_numbers<[1], [0], [0], [1], [0, 0, 1, 1], [], []>} : vector<32x32xf32>, vector<32x32xf32>, vector<32x32xf32> -> vector<32x32xf32>
    %110 = arith.maximumf %92, %109 : vector<32x32xf32>
    %111 = arith.subf %92, %110 : vector<32x32xf32>
    %112 = math.exp %111 : vector<32x32xf32>
    %113 = arith.subf %109, %110 : vector<32x32xf32>
    %114 = math.exp %113 : vector<32x32xf32>
    %115 = arith.mulf %112, %98 : vector<32x32xf32>
    %116 = arith.addf %115, %114 : vector<32x32xf32>
    %117 = arith.mulf %112, %101 : vector<32x32xf32>
    %118 = arith.mulf %114, %106 : vector<32x32xf32>
    %119 = arith.addf %117, %118 : vector<32x32xf32>
    %c0_54 = arith.constant 0 : index
    %c448 = arith.constant 448 : index
    %120 = vector.load %arg2[%c0_54, %c448] : memref<32x512xbf16, #tpu.memory_space<vmem>>, vector<32x64xbf16>
    %c0_55 = arith.constant 0 : index
    %c0_56 = arith.constant 0 : index
    %121 = vector.load %arg4[%c0_55, %c0_56] : memref<64x64xbf16, #tpu.memory_space<vmem>>, vector<64x64xbf16>
    %cst_57 = arith.constant dense<0.000000e+00> : vector<32x64xf32>
    %122 = tpu.matmul %120, %121, %cst_57 {dimension_numbers = #tpu.dot_dimension_numbers<[1], [0], [0], [1], [0, 0, 1, 1], [], []>} : vector<32x64xbf16>, vector<64x64xbf16>, vector<32x64xf32> -> vector<32x64xf32>
    %123 = vector.extract_strided_slice %122 {offsets = [0, 0], sizes = [32, 32], strides = [1, 1]} : vector<32x64xf32> to vector<32x32xf32>
    %124 = vector.extract_strided_slice %122 {offsets = [0, 32], sizes = [32, 32], strides = [1, 1]} : vector<32x64xf32> to vector<32x32xf32>
    %125 = arith.mulf %2, %123 : vector<32x32xf32>
    %c0_58 = arith.constant 0 : index
    %c0_59 = arith.constant 0 : index
    %126 = vector.load %arg5[%c0_58, %c0_59] : memref<32x32xf32, #tpu.memory_space<vmem>>, vector<32x32xf32>
    %cst_60 = arith.constant dense<0.000000e+00> : vector<32x32xf32>
    %127 = tpu.matmul %125, %126, %cst_60 {dimension_numbers = #tpu.dot_dimension_numbers<[1], [0], [0], [1], [0, 0, 1, 1], [], []>} : vector<32x32xf32>, vector<32x32xf32>, vector<32x32xf32> -> vector<32x32xf32>
    %128 = arith.maximumf %110, %127 : vector<32x32xf32>
    %129 = arith.subf %110, %128 : vector<32x32xf32>
    %130 = math.exp %129 : vector<32x32xf32>
    %131 = arith.subf %127, %128 : vector<32x32xf32>
    %132 = math.exp %131 : vector<32x32xf32>
    %133 = arith.mulf %130, %116 : vector<32x32xf32>
    %134 = arith.addf %133, %132 : vector<32x32xf32>
    %135 = arith.mulf %130, %119 : vector<32x32xf32>
    %136 = arith.mulf %132, %124 : vector<32x32xf32>
    %137 = arith.addf %135, %136 : vector<32x32xf32>
    %138 = arith.divf %137, %134 : vector<32x32xf32>
    %cst_61 = arith.constant 0.000000e+00 : f32
    %139 = vector.broadcast %cst_61 : f32 to vector<32x32xf32>
    %140 = arith.maximumf %138, %139 : vector<32x32xf32>
    %141 = math.absf %138 : vector<32x32xf32>
    %cst_62 = arith.constant 0.000000e+00 : f32
    %142 = vector.broadcast %cst_62 : f32 to vector<32x32xf32>
    %143 = arith.subf %142, %141 : vector<32x32xf32>
    %144 = math.exp %143 : vector<32x32xf32>
    %cst_63 = arith.constant 1.000000e+00 : f32
    %145 = vector.broadcast %cst_63 : f32 to vector<32x32xf32>
    %146 = arith.addf %145, %144 : vector<32x32xf32>
    %147 = math.log %146 : vector<32x32xf32>
    %148 = arith.addf %140, %147 : vector<32x32xf32>
    %cst_64 = arith.constant 0.693147182 : f32
    %149 = vector.broadcast %cst_64 : f32 to vector<32x32xf32>
    %150 = arith.subf %148, %149 : vector<32x32xf32>
    %151 = arith.truncf %150 : vector<32x32xf32> to vector<32x32xbf16>
    %c0_65 = arith.constant 0 : index
    %c0_66 = arith.constant 0 : index
    %152 = vector.load %arg6[%c0_65, %c0_66] : memref<32x32xbf16, #tpu.memory_space<vmem>>, vector<32x32xbf16>
    %cst_67 = arith.constant dense<0.000000e+00> : vector<32x32xf32>
    %153 = tpu.matmul %151, %152, %cst_67 {dimension_numbers = #tpu.dot_dimension_numbers<[1], [0], [0], [1], [0, 0, 1, 1], [], []>} : vector<32x32xbf16>, vector<32x32xbf16>, vector<32x32xf32> -> vector<32x32xf32>
    %c0_68 = arith.constant 0 : index
    %c0_69 = arith.constant 0 : index
    %154 = vector.load %arg7[%c0_68, %c0_69] : memref<32x32xf32, #tpu.memory_space<vmem>>, vector<32x32xf32>
    tpu.vector_store %arg7[%c0_68, %c0_69], %153 {strides = array<i32>} : memref<32x32xf32, #tpu.memory_space<vmem>>, vector<32x32xf32>,
    return
  }
  func.func @transform_0(%arg0: i32) -> (i32, i32) {
    %c0_i32 = arith.constant 0 : i32
    %c0_i32_0 = arith.constant 0 : i32
    return %arg0, %c0_i32 : i32, i32
  }
  func.func @transform_1(%arg0: i32) -> (i32, i32) {
    %c0_i32 = arith.constant 0 : i32
    %c0_i32_0 = arith.constant 0 : i32
    return %arg0, %c0_i32 : i32, i32
  }
  func.func @transform_2(%arg0: i32) -> (i32, i32) {
    %c0_i32 = arith.constant 0 : i32
    %c0_i32_0 = arith.constant 0 : i32
    %c0_i32_1 = arith.constant 0 : i32
    return %c0_i32, %c0_i32_0 : i32, i32
  }
  func.func @transform_3(%arg0: i32) -> (i32, i32) {
    %c0_i32 = arith.constant 0 : i32
    %c0_i32_0 = arith.constant 0 : i32
    %c0_i32_1 = arith.constant 0 : i32
    return %c0_i32, %c0_i32_0 : i32, i32
  }
  func.func @transform_4(%arg0: i32) -> (i32, i32) {
    %c0_i32 = arith.constant 0 : i32
    %c0_i32_0 = arith.constant 0 : i32
    %c0_i32_1 = arith.constant 0 : i32
    return %c0_i32, %c0_i32_0 : i32, i32
  }
  func.func @transform_5(%arg0: i32) -> (i32, i32) {
    %c0_i32 = arith.constant 0 : i32
    %c0_i32_0 = arith.constant 0 : i32
    %c0_i32_1 = arith.constant 0 : i32
    return %c0_i32, %c0_i32_0 : i32, i32
  }
  func.func @transform_6(%arg0: i32) -> (i32, i32) {
    %c0_i32 = arith.constant 0 : i32
    %c0_i32_0 = arith.constant 0 : i32
    return %arg0, %c0_i32 : i32, i32
  }
}

</mosaic_0001>

<llo_original>
// kernel: tpu_custom_call.1
$region0: #{tpu_custom_call.1}
  #allocation0 [shape = 'u32[]', space=smem, size = 0x4, offset = 0x4, fixed_abs, tag = 'smem constant byte address 0x4 - core index']
  #allocation1 [shape = 'u32[144,128]{1,0:T(1,128)}', space=vmem, size = 0x12000, scoped, tag = 'internal scratch']
  %s0 = inlined_call_operand.vmem [shape: bf16[64,32], index: 0, kind: input, shape index: {}]
  %s1 = inlined_call_operand.hbm [shape: bf16[64,512], index: 1, kind: input, shape index: {}]
  %s2 = inlined_call_operand.vmem [shape: bf16[32,32], index: 2, kind: input, shape index: {}]
  %s3 = inlined_call_operand.vmem [shape: bf16[64,64], index: 3, kind: input, shape index: {}]
  %s4 = inlined_call_operand.hbm [shape: f32[32,32], index: 4, kind: input, shape index: {}]
  %s5 = inlined_call_operand.vmem [shape: bf16[32,32], index: 5, kind: input, shape index: {}]
  %s6 = inlined_call_operand.vmem [shape: f32[64,32], index: 6, kind: output, shape index: {}]
  %s7 = sld [smem:[#allocation0]]
  $region65: #{tpu_custom_call.1} parent=0
    _
  %s9 = ssub.s32 1, %s7
  %s10 = scalar_select 0, %s9, %s7
  $region1: #{tpu_custom_call.1} parent=0
    #allocation2 [shape = 'u8[65536]{0}', space=vmem, size = 0x10000, scoped, tag = 'input window, operand 1']
    #allocation3 [shape = 's32[2]{0}', space=sflag, size = 0x8, scoped, tag = 'scoped memory for tpu_custom_call.1']
    #allocation4 [shape = 'u8[16384]{0}', space=vmem, size = 0x4000, scoped, tag = 'input window, operand 4, single buffered']
    #allocation5 [shape = 's32[1]{0}', space=sflag, size = 0x4, scoped, tag = 'scoped memory for tpu_custom_call.1']
    %11 = vsyncpa [#allocation3], 0
    %s12 = scalar_lea.sflag [#allocation3], 1
    %13 = vsyncpa %s12, 0
    %14 = vsyncpa [#allocation5], 0
    loop: start=0, step=1, limit=4
    $region2: #{tpu_custom_call.1} parent=1 // loop_pre_header
      _
    $region3: #{tpu_custom_call.1} parent=1 // loop_header
      %s16 = sphi 0, %s20
      %p17 = scmp.ge.s32.totalorder %s16, 4
      %s26 = sphi 0, %s28
      %s29 = sphi 0, %s26
      %s30 = sphi 0, %s29
      %s46 = sphi 0, %s30
      %s52 = sphi 0, %s54
      %s55 = sphi 0, %s52
      %s56 = sphi 0, %s55
      %s72 = sphi 0, %s56
      %s76 = sphi 0, %s76
      %s78 = sphi 0, %s76
      %s79 = sphi 0, %s78
      %s93 = sphi 0, %s79
      %s97 = sphi 0, %s97
      %s99 = sphi 0, %s97
      %s100 = sphi 0, %s99
      %s114 = sphi 0, %s100
      %s118 = sphi 0, %s118
      %s120 = sphi 0, %s118
      %s121 = sphi 0, %s120
      %s135 = sphi 0, %s121
      %s139 = sphi 0, %s139
      %s141 = sphi 0, %s139
      %s142 = sphi 0, %s141
      %s156 = sphi 0, %s142
      %s162 = sphi 0, %s164
      %s165 = sphi 0, %s162
      %s166 = sphi 0, %s165
      %s182 = sphi 0, %s166
    $region4: #{tpu_custom_call.1} parent=1 // loop_header_branch
      %19 = sbr.rel (%p17) target = $region8
    $region5: #{tpu_custom_call.1} parent=1 // loop_body
      %s21 = ssub.s32 %s16, 1
      %s22 = ssub.s32 %s16, 2
      %s23 = sadd.s32 %s16, 1
      %s24 = ssub.s32 %s16, %s23
      %p25 = scmp.eq.s32.totalorder %s24, 0
      %s27 = sadd.s32 %s26, 1
      %s28 = scalar_select %p25, %s26, %s27
      %p31 = pneg %p25
      %p32 = scmp.eq.s32.totalorder %s16, 1
      %p33 = por %p31, %p32
      %p34 = scmp.ne.s32.totalorder %s26, %s29
      %p35 = scmp.eq.s32.totalorder %s16, 0
      %p36 = por %p34, %p35
      %p37 = scmp.ne.s32.totalorder %s26, %s29
      %p38 = scmp.eq.s32.totalorder %s21, 1
      %p39 = por %p37, %p38
      %p40 = scmp.ne.s32.totalorder %s29, %s30
      %p41 = scmp.eq.s32.totalorder %s21, 0
      %p42 = por %p40, %p41
      %p43 = scmp.ne.s32.totalorder %s29, %s30
      %p44 = scmp.eq.s32.totalorder %s22, 1
      %p45 = por %p43, %p44
      %p47 = scmp.ne.s32.totalorder %s30, %s46
      %p48 = scmp.eq.s32.totalorder %s22, 0
      %p49 = por %p47, %p48
      %s50 = ssub.s32 %s16, %s23
      %p51 = scmp.eq.s32.totalorder %s50, 0
      %s53 = sadd.s32 %s52, 1
      %s54 = scalar_select %p51, %s52, %s53
      %p57 = pneg %p51
      %p58 = scmp.eq.s32.totalorder %s16, 1
      %p59 = por %p57, %p58
      %p60 = scmp.ne.s32.totalorder %s52, %s55
      %p61 = scmp.eq.s32.totalorder %s16, 0
      %p62 = por %p60, %p61
      %p63 = scmp.ne.s32.totalorder %s52, %s55
      %p64 = scmp.eq.s32.totalorder %s21, 1
      %p65 = por %p63, %p64
      %p66 = scmp.ne.s32.totalorder %s55, %s56
      %p67 = scmp.eq.s32.totalorder %s21, 0
      %p68 = por %p66, %p67
      %p69 = scmp.ne.s32.totalorder %s55, %s56
      %p70 = scmp.eq.s32.totalorder %s22, 1
      %p71 = por %p69, %p70
      %p73 = scmp.ne.s32.totalorder %s56, %s72
      %p74 = scmp.eq.s32.totalorder %s22, 0
      %p75 = por %p73, %p74
      %s77 = sadd.s32 %s76, 1
      %p80 = scmp.eq.s32.totalorder %s16, 1
      %p81 = scmp.ne.s32.totalorder %s76, %s78
      %p82 = scmp.eq.s32.totalorder %s16, 0
      %p83 = por %p81, %p82
      %p84 = scmp.ne.s32.totalorder %s76, %s78
      %p85 = scmp.eq.s32.totalorder %s21, 1
      %p86 = por %p84, %p85
      %p87 = scmp.ne.s32.totalorder %s78, %s79
      %p88 = scmp.eq.s32.totalorder %s21, 0
      %p89 = por %p87, %p88
      %p90 = scmp.ne.s32.totalorder %s78, %s79
      %p91 = scmp.eq.s32.totalorder %s22, 1
      %p92 = por %p90, %p91
      %p94 = scmp.ne.s32.totalorder %s79, %s93
      %p95 = scmp.eq.s32.totalorder %s22, 0
      %p96 = por %p94, %p95
      %s98 = sadd.s32 %s97, 1
      %p101 = scmp.eq.s32.totalorder %s16, 1
      %p102 = scmp.ne.s32.totalorder %s97, %s99
      %p103 = scmp.eq.s32.totalorder %s16, 0
      %p104 = por %p102, %p103
      %p105 = scmp.ne.s32.totalorder %s97, %s99
      %p106 = scmp.eq.s32.totalorder %s21, 1
      %p107 = por %p105, %p106
      %p108 = scmp.ne.s32.totalorder %s99, %s100
      %p109 = scmp.eq.s32.totalorder %s21, 0
      %p110 = por %p108, %p109
      %p111 = scmp.ne.s32.totalorder %s99, %s100
      %p112 = scmp.eq.s32.totalorder %s22, 1
      %p113 = por %p111, %p112
      %p115 = scmp.ne.s32.totalorder %s100, %s114
      %p116 = scmp.eq.s32.totalorder %s22, 0
      %p117 = por %p115, %p116
      %s119 = sadd.s32 %s118, 1
      %p122 = scmp.eq.s32.totalorder %s16, 1
      %p123 = scmp.ne.s32.totalorder %s118, %s120
      %p124 = scmp.eq.s32.totalorder %s16, 0
      %p125 = por %p123, %p124
      %p126 = scmp.ne.s32.totalorder %s118, %s120
      %p127 = scmp.eq.s32.totalorder %s21, 1
      %p128 = por %p126, %p127
      %p129 = scmp.ne.s32.totalorder %s120, %s121
      %p130 = scmp.eq.s32.totalorder %s21, 0
      %p131 = por %p129, %p130
      %p132 = scmp.ne.s32.totalorder %s120, %s121
      %p133 = scmp.eq.s32.totalorder %s22, 1
      %p134 = por %p132, %p133
      %p136 = scmp.ne.s32.totalorder %s121, %s135
      %p137 = scmp.eq.s32.totalorder %s22, 0
      %p138 = por %p136, %p137
      %s140 = sadd.s32 %s139, 1
      %p143 = scmp.eq.s32.totalorder %s16, 1
      %p144 = scmp.ne.s32.totalorder %s139, %s141
      %p145 = scmp.eq.s32.totalorder %s16, 0
      %p146 = por %p144, %p145
      %p147 = scmp.ne.s32.totalorder %s139, %s141
      %p148 = scmp.eq.s32.totalorder %s21, 1
      %p149 = por %p147, %p148
      %p150 = scmp.ne.s32.totalorder %s141, %s142
      %p151 = scmp.eq.s32.totalorder %s21, 0
      %p152 = por %p150, %p151
      %p153 = scmp.ne.s32.totalorder %s141, %s142
      %p154 = scmp.eq.s32.totalorder %s22, 1
      %p155 = por %p153, %p154
      %p157 = scmp.ne.s32.totalorder %s142, %s156
      %p158 = scmp.eq.s32.totalorder %s22, 0
      %p159 = por %p157, %p158
      %s160 = ssub.s32 %s16, %s23
      %p161 = scmp.eq.s32.totalorder %s160, 0
      %s163 = sadd.s32 %s162, 1
      %s164 = scalar_select %p161, %s162, %s163
      %p167 = pneg %p161
      %p168 = scmp.eq.s32.totalorder %s16, 1
      %p169 = por %p167, %p168
      %p170 = scmp.ne.s32.totalorder %s162, %s165
      %p171 = scmp.eq.s32.totalorder %s16, 0
      %p172 = por %p170, %p171
      %p173 = scmp.ne.s32.totalorder %s162, %s165
      %p174 = scmp.eq.s32.totalorder %s21, 1
      %p175 = por %p173, %p174
      %p176 = scmp.ne.s32.totalorder %s165, %s166
      %p177 = scmp.eq.s32.totalorder %s21, 0
      %p178 = por %p176, %p177
      %p179 = scmp.ne.s32.totalorder %s165, %s166
      %p180 = scmp.eq.s32.totalorder %s22, 1
      %p181 = por %p179, %p180
      %p183 = scmp.ne.s32.totalorder %s166, %s182
      %p184 = scmp.eq.s32.totalorder %s22, 0
      %p185 = por %p183, %p184
      %p186 = scmp.le.s32.totalorder 1, %s16
      %p187 = scmp.lt.s32.totalorder %s16, 3
      %p188 = pnand %p186, %p187
      %p189 = pneg %p188
      // Predicated region
      $region9: #{tpu_custom_call.1} parent=5 // pred_check
        _
      $region10: #{tpu_custom_call.1} parent=5 // pred_check_branch
        %191 = sbr.rel (%p188) target = $region12
      $region11: #{tpu_custom_call.1} parent=5 // pred_region
        %s192 = ssub.s32 %s16, 1
        // Predicated region
        $region13: #{tpu_custom_call.1} parent=11 // pred_check
          %p193 = pneg %p89
        $region14: #{tpu_custom_call.1} parent=11 // pred_check_branch
          %195 = sbr.rel (%p193) target = $region16
        $region15: #{tpu_custom_call.1} parent=11 // pred_region
          _
        $region16: #{tpu_custom_call.1} parent=11 // pred_fallthru
          _
        // Predicated region
        $region17: #{tpu_custom_call.1} parent=11 // pred_check
          %p196 = pneg %p110
        $region18: #{tpu_custom_call.1} parent=11 // pred_check_branch
          %198 = sbr.rel (%p196) target = $region20
        $region19: #{tpu_custom_call.1} parent=11 // pred_region
          _
        $region20: #{tpu_custom_call.1} parent=11 // pred_fallthru
          _
        // Predicated region
        $region21: #{tpu_custom_call.1} parent=11 // pred_check
          %p199 = pneg %p131
        $region22: #{tpu_custom_call.1} parent=11 // pred_check_branch
          %201 = sbr.rel (%p199) target = $region24
        $region23: #{tpu_custom_call.1} parent=11 // pred_region
          %s203 = ssub.s32 512, 512
          %204 = vsyncadd [#allocation5], %s203
          %s205 = sshll.u32 [#allocation4], 4
          %s206 = int_to_ptr.vmem [resolvable:$true] %s205
          %211 = dma.hbm_to_vmem [thread:$0]  %s4, 512, %s206, [#allocation5], 128, 128, 8
        $region24: #{tpu_custom_call.1} parent=11 // pred_fallthru
          _
        // Predicated region
        $region25: #{tpu_custom_call.1} parent=11 // pred_check
          %p212 = pneg %p152
        $region26: #{tpu_custom_call.1} parent=11 // pred_check_branch
          %214 = sbr.rel (%p212) target = $region28
        $region27: #{tpu_custom_call.1} parent=11 // pred_region
          _
        $region28: #{tpu_custom_call.1} parent=11 // pred_fallthru
          _
      $region12: #{tpu_custom_call.1} parent=5 // pred_fallthru
        _
      %p215 = scmp.lt.s32.totalorder %s16, 2
      // Predicated region
      $region29: #{tpu_custom_call.1} parent=5 // pred_check
        %p216 = pneg %p215
      $region30: #{tpu_custom_call.1} parent=5 // pred_check_branch
        %218 = sbr.rel (%p216) target = $region32
      $region31: #{tpu_custom_call.1} parent=5 // pred_region
        // Predicated region
        $region33: #{tpu_custom_call.1} parent=31 // pred_check
          %p219 = pneg %p36
        $region34: #{tpu_custom_call.1} parent=31 // pred_check_branch
          %221 = sbr.rel (%p219) target = $region36
        $region35: #{tpu_custom_call.1} parent=31 // pred_region
          %s222 = smul.u32 4, %s16
          %p223 = scmp.lt.s32.totalorder %s222, 7
          %s224 = scalar_select %p223, %s222, 7
          %s225 = smul.addr %s224, 4
          %s226 = scalar_lea.vmem %s0, %s225
          %s227 = smul.u32 4, %s16
        $region36: #{tpu_custom_call.1} parent=31 // pred_fallthru
          _
        // Predicated region
        $region37: #{tpu_custom_call.1} parent=31 // pred_check
          %p228 = pneg %p62
        $region38: #{tpu_custom_call.1} parent=31 // pred_check_branch
          %230 = sbr.rel (%p228) target = $region40
        $region39: #{tpu_custom_call.1} parent=31 // pred_region
          %s231 = sand.u32 %s52, 1
          %s232 = scalar_lea.sflag [#allocation3], %s231
          %s233 = sand.u32 %s52, 1
          %s234 = smul.addr %s233, 64
          %s235 = scalar_lea.vmem [#allocation2], %s234
          %s236 = smul.u32 4, %s16
          %s238 = ssub.s32 1024, 1024
          %239 = vsyncadd %s232, %s238
          %s240 = smul.addr %s236, 4
          %s241 = smul.addr %s240, 64
          %s242 = scalar_lea.hbm %s1, %s241
          %s243 = sshll.u32 %s235, 4
          %s244 = int_to_ptr.vmem [resolvable:$true] %s243
          %249 = dma.hbm_to_vmem [thread:$0]  %s242, 1024, %s244, %s232, 256, 256, 16
        $region40: #{tpu_custom_call.1} parent=31 // pred_fallthru
          _
      $region32: #{tpu_custom_call.1} parent=5 // pred_fallthru
        _
      %p250 = scmp.le.s32.totalorder 1, %s16
      %p251 = scmp.lt.s32.totalorder %s16, 3
      %p252 = pnand %p250, %p251
      %p253 = pneg %p252
      // Predicated region
      $region41: #{tpu_custom_call.1} parent=5 // pred_check
        _
      $region42: #{tpu_custom_call.1} parent=5 // pred_check_branch
        %255 = sbr.rel (%p252) target = $region44
      $region43: #{tpu_custom_call.1} parent=5 // pred_region
        %s256 = ssub.s32 %s16, 1
        %s257 = sand.u32 %s55, 1
        %s258 = scalar_lea.sflag [#allocation3], %s257
        %s259 = sand.u32 %s55, 1
        %s260 = smul.addr %s259, 64
        %s261 = scalar_lea.vmem [#allocation2], %s260
        // Predicated region
        $region45: #{tpu_custom_call.1} parent=43 // pred_check
          %p262 = pneg %p68
        $region46: #{tpu_custom_call.1} parent=43 // pred_check_branch
          %264 = sbr.rel (%p262) target = $region48
        $region47: #{tpu_custom_call.1} parent=43 // pred_region
          %265 = dma.done %s258, 1024
        $region48: #{tpu_custom_call.1} parent=43 // pred_fallthru
          _
        // Predicated region
        $region49: #{tpu_custom_call.1} parent=43 // pred_check
          %p266 = pneg %p131
        $region50: #{tpu_custom_call.1} parent=43 // pred_check_branch
          %268 = sbr.rel (%p266) target = $region52
        $region51: #{tpu_custom_call.1} parent=43 // pred_region
          %269 = dma.done [#allocation5], 512
        $region52: #{tpu_custom_call.1} parent=43 // pred_fallthru
          _
        %s270 = smul.u32 4, %s21
        %p271 = scmp.lt.s32.totalorder %s270, 7
        %s272 = scalar_select %p271, %s270, 7
        %s273 = smul.addr %s272, 4
        %s274 = scalar_lea.vmem %s0, %s273
        %p275 = pneg %p42
        %p276 = pneg %p39
        %s277 = sand.u32 %s55, 1
        %s278 = scalar_lea.sflag [#allocation3], %s277
        %s279 = sand.u32 %s55, 1
        %s280 = smul.addr %s279, 64
        %s281 = scalar_lea.vmem [#allocation2], %s280
        %p282 = pneg %p68
        %p283 = pneg %p65
        %p284 = pneg %p89
        %p285 = pneg %p86
        %p286 = pneg %p110
        %p287 = pneg %p107
        %p288 = pneg %p131
        %p289 = pneg %p128
        %p290 = pneg %p152
        %p291 = pneg %p149
        %p292 = pneg %p178
        %p293 = pneg %p175
        %s294 = smul.u32 4, %s21
        %p295 = scmp.lt.s32.totalorder %s294, 7
        %s296 = scalar_select %p295, %s294, 7
        %s297 = smul.addr %s296, 8
        %s298 = scalar_lea.vmem %s6, %s297
        %s299 = smul.u32 4, %s21
        %p300 = scmp.lt.s32.totalorder %s299, 7
        %s301 = scalar_select %p300, %s299, 7
        %s302 = smul.addr %s301, 4
        %s303 = scalar_lea.vmem %s0, %s302
        %s304 = smul.u32 4, %s21
        %s305 = smul.u32 4, %s21
        %s306 = smul.u32 4, %s21
        %p307 = scmp.lt.s32.totalorder %s306, 7
        %s308 = scalar_select %p307, %s306, 7
        %s309 = smul.addr %s308, 8
        %s310 = scalar_lea.vmem %s6, %s309
        %s311 = smul.u32 4, %s21
        %v313 = vld [vmem:[%s303] sm:$0xf]
        %v314 = vld [vmem:[%s303 + $0x4] sm:$0xf]
        %v315 = vld [vmem:[%s303 + $0x8] sm:$0xf]
        %v316 = vld [vmem:[%s303 + $0xc] sm:$0xf]
        %v317 = vld [vmem:[%s2] sm:$0xf]
        %v318 = vld [vmem:[%s2 + $0x4] sm:$0xf]
        %v319 = vld [vmem:[%s2 + $0x8] sm:$0xf]
        %v320 = vld [vmem:[%s2 + $0xc] sm:$0xf]
        %v325 = vunpack.c.l.b16 %v313
        %v326 = vunpack.c.l.b16 %v314
        %v327 = vunpack.c.l.b16 %v315
        %v328 = vunpack.c.l.b16 %v316
        %v329 = vpack.c.b16 %v326, %v325
        %v330 = vpack.c.b16 %v328, %v327
        %v335 = vunpack.c.l.b16 %v317
        %v336 = vunpack.c.l.b16 %v318
        %v337 = vunpack.c.l.b16 %v319
        %v338 = vunpack.c.l.b16 %v320
        %v339 = vpack.c.b16 %v336, %v335
        %v340 = vpack.c.b16 %v338, %v337
        %vm343 = vcmask 261120
        %v345 = vsel %vm343, %v329, 0
        %v348 = vsel %vm343, %v330, 0
        %350 = vmatprep.subr.bf16.mxu0 0
        %351 = vmatpush1.bf16.msra.mxu0 %v339
        %352 = vmatprep.subr.bf16.mxu0 0
        %353 = vmatpush1.bf16.msra.mxu0 %v340
        %354 = vmatprep.subr.bf16.mxu0 0
        %355 = vmatpush1.bf16.msra.mxu0 0
        %356 = vmatprep.subr.bf16.mxu0 0
        %357 = vmatpush1.bf16.msra.mxu0 0
        %358 = vmatprep.subr.bf16.mxu0 0
        %359 = vmatpush1.bf16.msra.mxu0 0
        %360 = vmatprep.subr.bf16.mxu0 0
        %361 = vmatpush1.bf16.msra.mxu0 0
        %362 = vmatprep.subr.bf16.mxu0 0
        %363 = vmatpush1.bf16.msra.mxu0 0
        %364 = vmatprep.subr.bf16.mxu0 0
        %365 = vmatpush1.bf16.msra.mxu0 0
        %366 = vmatprep.subr.bf16.mxu0 0
        %367 = vmatpush1.bf16.msra.mxu0 0
        %368 = vmatprep.subr.bf16.mxu0 0
        %369 = vmatpush1.bf16.msra.mxu0 0
        %370 = vmatprep.subr.bf16.mxu0 0
        %371 = vmatpush1.bf16.msra.mxu0 0
        %372 = vmatprep.subr.bf16.mxu0 0
        %373 = vmatpush1.bf16.msra.mxu0 0
        %374 = vmatprep.subr.bf16.mxu0 0
        %375 = vmatpush1.bf16.msra.mxu0 0
        %376 = vmatprep.subr.bf16.mxu0 0
        %377 = vmatpush1.bf16.msra.mxu0 0
        %378 = vmatprep.subr.bf16.mxu0 0
        %379 = vmatpush1.bf16.msra.mxu0 0
        %380 = vmatprep.subr.bf16.mxu0 0
        %381 = vmatpush1.bf16.msra.mxu0 0
        %382 = vmatprep.mubr.bf16.mxu0 0
        %383 = vmatmul.mubr.bf16.gmra.mrb[0].mxu0 %v345
        %v384 = vpop.f32.mrb[0].mxu0
        %v385 = vadd.f32 0.0, %v384
        %v386 = vpop.f32.mrb[0].mxu0
        %v387 = vpop.f32.mrb[0].mxu0
        %v388 = vadd.f32 0.0, %v387
        %v389 = vpop.f32.mrb[0].mxu0
        %390 = vmatprep.mubr.bf16.mxu0 0
        %391 = vmatmul.mubr.bf16.gmra.mrb[0].mxu0 %v348
        %v392 = vpop.f32.mrb[0].mxu0
        %v393 = vadd.f32 0.0, %v392
        %v394 = vpop.f32.mrb[0].mxu0
        %v395 = vpop.f32.mrb[0].mxu0
        %v396 = vadd.f32 0.0, %v395
        %v397 = vpop.f32.mrb[0].mxu0
        %398 = vdwg.mxu0
        %v399 = vld [vmem:[%s261] sm:$0xf]
        %v400 = vld [vmem:[%s261 + $0x10] sm:$0xf]
        %v401 = vld [vmem:[%s261 + $0x20] sm:$0xf]
        %v402 = vld [vmem:[%s261 + $0x30] sm:$0xf]
        %v403 = vld [vmem:[%s3] sm:$0xf]
        %v404 = vld [vmem:[%s3 + $0x4] sm:$0xf]
        %v405 = vld [vmem:[%s3 + $0x8] sm:$0xf]
        %v406 = vld [vmem:[%s3 + $0xc] sm:$0xf]
        %v407 = vld [vmem:[%s3 + $0x10] sm:$0xf]
        %v408 = vld [vmem:[%s3 + $0x14] sm:$0xf]
        %v409 = vld [vmem:[%s3 + $0x18] sm:$0xf]
        %v410 = vld [vmem:[%s3 + $0x1c] sm:$0xf]
        %v415 = vunpack.c.l.b16 %v399
        %v416 = vunpack.c.l.b16 %v400
        %v417 = vunpack.c.l.b16 %v401
        %v418 = vunpack.c.l.b16 %v402
        %v419 = vpack.c.b16 %v416, %v415
        %v420 = vpack.c.b16 %v418, %v417
        %v429 = vunpack.c.l.b16 %v403
        %v430 = vunpack.c.l.b16 %v404
        %v431 = vunpack.c.l.b16 %v405
        %v432 = vunpack.c.l.b16 %v406
        %v433 = vunpack.c.l.b16 %v407
        %v434 = vunpack.c.l.b16 %v408
        %v435 = vunpack.c.l.b16 %v409
        %v436 = vunpack.c.l.b16 %v410
        %v437 = vpack.c.b16 %v430, %v429
        %v438 = vpack.c.b16 %v432, %v431
        %v439 = vpack.c.b16 %v434, %v433
        %v440 = vpack.c.b16 %v436, %v435
        %vm445 = vcmask 523264
        %v447 = vsel %vm445, %v419, 0
        %v450 = vsel %vm445, %v420, 0
        %452 = vmatprep.subr.bf16.mxu0 0
        %453 = vmatpush1.bf16.msra.mxu0 %v437
        %454 = vmatprep.subr.bf16.mxu0 0
        %455 = vmatpush1.bf16.msra.mxu0 %v438
        %456 = vmatprep.subr.bf16.mxu0 0
        %457 = vmatpush1.bf16.msra.mxu0 %v439
        %458 = vmatprep.subr.bf16.mxu0 0
        %459 = vmatpush1.bf16.msra.mxu0 %v440
        %460 = vmatprep.subr.bf16.mxu0 0
        %461 = vmatpush1.bf16.msra.mxu0 0
        %462 = vmatprep.subr.bf16.mxu0 0
        %463 = vmatpush1.bf16.msra.mxu0 0
        %464 = vmatprep.subr.bf16.mxu0 0
        %465 = vmatpush1.bf16.msra.mxu0 0
        %466 = vmatprep.subr.bf16.mxu0 0
        %467 = vmatpush1.bf16.msra.mxu0 0
        %468 = vmatprep.subr.bf16.mxu0 0
        %469 = vmatpush1.bf16.msra.mxu0 0
        %470 = vmatprep.subr.bf16.mxu0 0
        %471 = vmatpush1.bf16.msra.mxu0 0
        %472 = vmatprep.subr.bf16.mxu0 0
        %473 = vmatpush1.bf16.msra.mxu0 0
        %474 = vmatprep.subr.bf16.mxu0 0
        %475 = vmatpush1.bf16.msra.mxu0 0
        %476 = vmatprep.subr.bf16.mxu0 0
        %477 = vmatpush1.bf16.msra.mxu0 0
        %478 = vmatprep.subr.bf16.mxu0 0
        %479 = vmatpush1.bf16.msra.mxu0 0
        %480 = vmatprep.subr.bf16.mxu0 0
        %481 = vmatpush1.bf16.msra.mxu0 0
        %482 = vmatprep.subr.bf16.mxu0 0
        %483 = vmatpush1.bf16.msra.mxu0 0
        %484 = vmatprep.mubr.bf16.mxu0 0
        %485 = vmatmul.mubr.bf16.gmra.mrb[0].mxu0 %v447
        %v486 = vpop.f32.mrb[0].mxu0
        %v487 = vadd.f32 0.0, %v486
        %v488 = vpop.f32.mrb[0].mxu0
        %v489 = vpop.f32.mrb[0].mxu0
        %v490 = vadd.f32 0.0, %v489
        %v491 = vpop.f32.mrb[0].mxu0
        %492 = vmatprep.mubr.bf16.mxu0 0
        %493 = vmatmul.mubr.bf16.gmra.mrb[0].mxu0 %v450
        %v494 = vpop.f32.mrb[0].mxu0
        %v495 = vadd.f32 0.0, %v494
        %v496 = vpop.f32.mrb[0].mxu0
        %v497 = vpop.f32.mrb[0].mxu0
        %v498 = vadd.f32 0.0, %v497
        %v499 = vpop.f32.mrb[0].mxu0
        %500 = vdwg.mxu0
        %v501 = vmul.f32 %v385, %v487
        %v502 = vmul.f32 %v388, %v490
        %v503 = vmul.f32 %v393, %v495
        %v504 = vmul.f32 %v396, %v498
        %v505 = vld [vmem:[#allocation4] sm:$0xff]
        %v506 = vld [vmem:[#allocation4 + $0x8] sm:$0xff]
        %v507 = vld [vmem:[#allocation4 + $0x10] sm:$0xff]
        %v508 = vld [vmem:[#allocation4 + $0x18] sm:$0xff]
        %v510 = vsel %vm343, %v501, 0
        %v513 = vsel %vm343, %v502, 0
        %v516 = vsel %vm343, %v503, 0
        %v519 = vsel %vm343, %v504, 0
        %521 = vmatprep.subr.mxu0 0.0
        %522 = vmatpush1.msra.mxu0 %v505
        %523 = vmatprep.subr.mxu0 0.0
        %524 = vmatpush1.msra.mxu0 %v506
        %525 = vmatprep.subr.mxu0 0.0
        %526 = vmatpush1.msra.mxu0 %v507
        %527 = vmatprep.subr.mxu0 0.0
        %528 = vmatpush1.msra.mxu0 %v508
        %529 = vmatprep.subr.mxu0 0.0
        %530 = vmatpush1.msra.mxu0 0.0
        %531 = vmatprep.subr.mxu0 0.0
        %532 = vmatpush1.msra.mxu0 0.0
        %533 = vmatprep.subr.mxu0 0.0
        %534 = vmatpush1.msra.mxu0 0.0
        %535 = vmatprep.subr.mxu0 0.0
        %536 = vmatpush1.msra.mxu0 0.0
        %537 = vmatprep.subr.mxu0 0.0
        %538 = vmatpush1.msra.mxu0 0.0
        %539 = vmatprep.subr.mxu0 0.0
        %540 = vmatpush1.msra.mxu0 0.0
        %541 = vmatprep.subr.mxu0 0.0
        %542 = vmatpush1.msra.mxu0 0.0
        %543 = vmatprep.subr.mxu0 0.0
        %544 = vmatpush1.msra.mxu0 0.0
        %545 = vmatprep.subr.mxu0 0.0
        %546 = vmatpush1.msra.mxu0 0.0
        %547 = vmatprep.subr.mxu0 0.0
        %548 = vmatpush1.msra.mxu0 0.0
        %549 = vmatprep.subr.mxu0 0.0
        %550 = vmatpush1.msra.mxu0 0.0
        %551 = vmatprep.subr.mxu0 0.0
        %552 = vmatpush1.msra.mxu0 0.0
        %553 = vmatprep.subr.mxu0 0.0
        %554 = vmatpush1.msra.mxu0 0.0
        %555 = vmatprep.subr.mxu0 0.0
        %556 = vmatpush1.msra.mxu0 0.0
        %557 = vmatprep.subr.mxu0 0.0
        %558 = vmatpush1.msra.mxu0 0.0
        %559 = vmatprep.subr.mxu0 0.0
        %560 = vmatpush1.msra.mxu0 0.0
        %561 = vmatprep.subr.mxu0 0.0
        %562 = vmatpush1.msra.mxu0 0.0
        %563 = vmatprep.subr.mxu0 0.0
        %564 = vmatpush1.msra.mxu0 0.0
        %565 = vmatprep.subr.mxu0 0.0
        %566 = vmatpush1.msra.mxu0 0.0
        %567 = vmatprep.subr.mxu0 0.0
        %568 = vmatpush1.msra.mxu0 0.0
        %569 = vmatprep.subr.mxu0 0.0
        %570 = vmatpush1.msra.mxu0 0.0
        %571 = vmatprep.subr.mxu0 0.0
        %572 = vmatpush1.msra.mxu0 0.0
        %573 = vmatprep.subr.mxu0 0.0
        %574 = vmatpush1.msra.mxu0 0.0
        %575 = vmatprep.subr.mxu0 0.0
        %576 = vmatpush1.msra.mxu0 0.0
        %577 = vmatprep.subr.mxu0 0.0
        %578 = vmatpush1.msra.mxu0 0.0
        %579 = vmatprep.subr.mxu0 0.0
        %580 = vmatpush1.msra.mxu0 0.0
        %581 = vmatprep.subr.mxu0 0.0
        %582 = vmatpush1.msra.mxu0 0.0
        %583 = vmatprep.subr.mxu0 0.0
        %584 = vmatpush1.msra.mxu0 0.0
        %585 = vmatprep.mubr.f32.mxu0 0.0
        %586 = vmatmul.mubr.f32.gmra.mrb[0].mxu0 %v510
        %v587 = vpop.f32.mrb[0].mxu0
        %v588 = vadd.f32 0.0, %v587
        %v589 = vpop.f32.mrb[0].mxu0
        %590 = vmatprep.mubr.f32.mxu0 0.0
        %591 = vmatmul.mubr.f32.gmra.mrb[0].mxu0 %v513
        %v592 = vpop.f32.mrb[0].mxu0
        %v593 = vadd.f32 0.0, %v592
        %v594 = vpop.f32.mrb[0].mxu0
        %595 = vmatprep.mubr.f32.mxu0 0.0
        %596 = vmatmul.mubr.f32.gmra.mrb[0].mxu0 %v516
        %v597 = vpop.f32.mrb[0].mxu0
        %v598 = vadd.f32 0.0, %v597
        %v599 = vpop.f32.mrb[0].mxu0
        %600 = vmatprep.mubr.f32.mxu0 0.0
        %601 = vmatmul.mubr.f32.gmra.mrb[0].mxu0 %v519
        %v602 = vpop.f32.mrb[0].mxu0
        %v603 = vadd.f32 0.0, %v602
        %v604 = vpop.f32.mrb[0].mxu0
        %605 = vdwg.mxu0
        %606 = vrot.lane.b32.xlu0 %v419, 64
        %v607 = vpop.permute.xlu0 %606
        %608 = vrot.lane.b32.xlu0 %v420, 64
        %v609 = vpop.permute.xlu0 %608
        %v611 = vsel %vm445, %v607, 0
        %v614 = vsel %vm445, %v609, 0
        %616 = vmatprep.subr.bf16.mxu0 0
        %617 = vmatpush1.bf16.msra.mxu0 %v437
        %618 = vmatprep.subr.bf16.mxu0 0
        %619 = vmatpush1.bf16.msra.mxu0 %v438
        %620 = vmatprep.subr.bf16.mxu0 0
        %621 = vmatpush1.bf16.msra.mxu0 %v439
        %622 = vmatprep.subr.bf16.mxu0 0
        %623 = vmatpush1.bf16.msra.mxu0 %v440
        %624 = vmatprep.subr.bf16.mxu0 0
        %625 = vmatpush1.bf16.msra.mxu0 0
        %626 = vmatprep.subr.bf16.mxu0 0
        %627 = vmatpush1.bf16.msra.mxu0 0
        %628 = vmatprep.subr.bf16.mxu0 0
        %629 = vmatpush1.bf16.msra.mxu0 0
        %630 = vmatprep.subr.bf16.mxu0 0
        %631 = vmatpush1.bf16.msra.mxu0 0
        %632 = vmatprep.subr.bf16.mxu0 0
        %633 = vmatpush1.bf16.msra.mxu0 0
        %634 = vmatprep.subr.bf16.mxu0 0
        %635 = vmatpush1.bf16.msra.mxu0 0
        %636 = vmatprep.subr.bf16.mxu0 0
        %637 = vmatpush1.bf16.msra.mxu0 0
        %638 = vmatprep.subr.bf16.mxu0 0
        %639 = vmatpush1.bf16.msra.mxu0 0
        %640 = vmatprep.subr.bf16.mxu0 0
        %641 = vmatpush1.bf16.msra.mxu0 0
        %642 = vmatprep.subr.bf16.mxu0 0
        %643 = vmatpush1.bf16.msra.mxu0 0
        %644 = vmatprep.subr.bf16.mxu0 0
        %645 = vmatpush1.bf16.msra.mxu0 0
        %646 = vmatprep.subr.bf16.mxu0 0
        %647 = vmatpush1.bf16.msra.mxu0 0
        %648 = vmatprep.mubr.bf16.mxu0 0
        %649 = vmatmul.mubr.bf16.gmra.mrb[0].mxu0 %v611
        %v650 = vpop.f32.mrb[0].mxu0
        %v651 = vadd.f32 0.0, %v650
        %v652 = vpop.f32.mrb[0].mxu0
        %v653 = vpop.f32.mrb[0].mxu0
        %v654 = vadd.f32 0.0, %v653
        %v655 = vpop.f32.mrb[0].mxu0
        %656 = vmatprep.mubr.bf16.mxu0 0
        %657 = vmatmul.mubr.bf16.gmra.mrb[0].mxu0 %v614
        %v658 = vpop.f32.mrb[0].mxu0
        %v659 = vadd.f32 0.0, %v658
        %v660 = vpop.f32.mrb[0].mxu0
        %v661 = vpop.f32.mrb[0].mxu0
        %v662 = vadd.f32 0.0, %v661
        %v663 = vpop.f32.mrb[0].mxu0
        %664 = vdwg.mxu0
        %v665 = vmul.f32 %v385, %v651
        %v666 = vmul.f32 %v388, %v654
        %v667 = vmul.f32 %v393, %v659
        %v668 = vmul.f32 %v396, %v662
        %v670 = vsel %vm343, %v665, 0
        %v673 = vsel %vm343, %v666, 0
        %v676 = vsel %vm343, %v667, 0
        %v679 = vsel %vm343, %v668, 0
        %681 = vmatprep.subr.mxu0 0.0
        %682 = vmatpush1.msra.mxu0 %v505
        %683 = vmatprep.subr.mxu0 0.0
        %684 = vmatpush1.msra.mxu0 %v506
        %685 = vmatprep.subr.mxu0 0.0
        %686 = vmatpush1.msra.mxu0 %v507
        %687 = vmatprep.subr.mxu0 0.0
        %688 = vmatpush1.msra.mxu0 %v508
        %689 = vmatprep.subr.mxu0 0.0
        %690 = vmatpush1.msra.mxu0 0.0
        %691 = vmatprep.subr.mxu0 0.0
        %692 = vmatpush1.msra.mxu0 0.0
        %693 = vmatprep.subr.mxu0 0.0
        %694 = vmatpush1.msra.mxu0 0.0
        %695 = vmatprep.subr.mxu0 0.0
        %696 = vmatpush1.msra.mxu0 0.0
        %697 = vmatprep.subr.mxu0 0.0
        %698 = vmatpush1.msra.mxu0 0.0
        %699 = vmatprep.subr.mxu0 0.0
        %700 = vmatpush1.msra.mxu0 0.0
        %701 = vmatprep.subr.mxu0 0.0
        %702 = vmatpush1.msra.mxu0 0.0
        %703 = vmatprep.subr.mxu0 0.0
        %704 = vmatpush1.msra.mxu0 0.0
        %705 = vmatprep.subr.mxu0 0.0
        %706 = vmatpush1.msra.mxu0 0.0
        %707 = vmatprep.subr.mxu0 0.0
        %708 = vmatpush1.msra.mxu0 0.0
        %709 = vmatprep.subr.mxu0 0.0
        %710 = vmatpush1.msra.mxu0 0.0
        %711 = vmatprep.subr.mxu0 0.0
        %712 = vmatpush1.msra.mxu0 0.0
        %713 = vmatprep.subr.mxu0 0.0
        %714 = vmatpush1.msra.mxu0 0.0
        %715 = vmatprep.subr.mxu0 0.0
        %716 = vmatpush1.msra.mxu0 0.0
        %717 = vmatprep.subr.mxu0 0.0
        %718 = vmatpush1.msra.mxu0 0.0
        %719 = vmatprep.subr.mxu0 0.0
        %720 = vmatpush1.msra.mxu0 0.0
        %721 = vmatprep.subr.mxu0 0.0
        %722 = vmatpush1.msra.mxu0 0.0
        %723 = vmatprep.subr.mxu0 0.0
        %724 = vmatpush1.msra.mxu0 0.0
        %725 = vmatprep.subr.mxu0 0.0
        %726 = vmatpush1.msra.mxu0 0.0
        %727 = vmatprep.subr.mxu0 0.0
        %728 = vmatpush1.msra.mxu0 0.0
        %729 = vmatprep.subr.mxu0 0.0
        %730 = vmatpush1.msra.mxu0 0.0
        %731 = vmatprep.subr.mxu0 0.0
        %732 = vmatpush1.msra.mxu0 0.0
        %733 = vmatprep.subr.mxu0 0.0
        %734 = vmatpush1.msra.mxu0 0.0
        %735 = vmatprep.subr.mxu0 0.0
        %736 = vmatpush1.msra.mxu0 0.0
        %737 = vmatprep.subr.mxu0 0.0
        %738 = vmatpush1.msra.mxu0 0.0
        %739 = vmatprep.subr.mxu0 0.0
        %740 = vmatpush1.msra.mxu0 0.0
        %741 = vmatprep.subr.mxu0 0.0
        %742 = vmatpush1.msra.mxu0 0.0
        %743 = vmatprep.subr.mxu0 0.0
        %744 = vmatpush1.msra.mxu0 0.0
        %745 = vmatprep.mubr.f32.mxu0 0.0
        %746 = vmatmul.mubr.f32.gmra.mrb[0].mxu0 %v670
        %v747 = vpop.f32.mrb[0].mxu0
        %v748 = vadd.f32 0.0, %v747
        %v749 = vpop.f32.mrb[0].mxu0
        %750 = vmatprep.mubr.f32.mxu0 0.0
        %751 = vmatmul.mubr.f32.gmra.mrb[0].mxu0 %v673
        %v752 = vpop.f32.mrb[0].mxu0
        %v753 = vadd.f32 0.0, %v752
        %v754 = vpop.f32.mrb[0].mxu0
        %755 = vmatprep.mubr.f32.mxu0 0.0
        %756 = vmatmul.mubr.f32.gmra.mrb[0].mxu0 %v676
        %v757 = vpop.f32.mrb[0].mxu0
        %v758 = vadd.f32 0.0, %v757
        %v759 = vpop.f32.mrb[0].mxu0
        %760 = vmatprep.mubr.f32.mxu0 0.0
        %761 = vmatmul.mubr.f32.gmra.mrb[0].mxu0 %v679
        %v762 = vpop.f32.mrb[0].mxu0
        %v763 = vadd.f32 0.0, %v762
        %v764 = vpop.f32.mrb[0].mxu0
        %765 = vdwg.mxu0
        %v766 = vmax.f32 %v588, %v748
        %v767 = vmax.f32 %v593, %v753
        %v768 = vmax.f32 %v598, %v758
        %v769 = vmax.f32 %v603, %v763
        %v770 = vsub.f32 %v588, %v766
        %v771 = vsub.f32 %v593, %v767
        %v772 = vsub.f32 %v598, %v768
        %v773 = vsub.f32 %v603, %v769
        %v774 = vmul.f32 %v770, 1.442695
        %v775 = vpow.pop %v774
        %v776 = vmul.f32 %v771, 1.442695
        %v777 = vpow.pop %v776
        %v778 = vmul.f32 %v772, 1.442695
        %v779 = vpow.pop %v778
        %v780 = vmul.f32 %v773, 1.442695
        %v781 = vpow.pop %v780
        %v782 = vsub.f32 %v748, %v766
        %v783 = vsub.f32 %v753, %v767
        %v784 = vsub.f32 %v758, %v768
        %v785 = vsub.f32 %v763, %v769
        %v786 = vmul.f32 %v782, 1.442695
        %v787 = vpow.pop %v786
        %v788 = vmul.f32 %v783, 1.442695
        %v789 = vpow.pop %v788
        %v790 = vmul.f32 %v784, 1.442695
        %v791 = vpow.pop %v790
        %v792 = vmul.f32 %v785, 1.442695
        %v793 = vpow.pop %v792
        %v794 = vadd.f32 %v775, %v787
        %v795 = vadd.f32 %v777, %v789
        %v796 = vadd.f32 %v779, %v791
        %v797 = vadd.f32 %v781, %v793
        %802 = vrot.lane.b32.xlu0 %v487, 96
        %v803 = vpop.permute.xlu0 %802
        %804 = vrot.lane.b32.xlu0 %v490, 96
        %v805 = vpop.permute.xlu0 %804
        %806 = vrot.lane.b32.xlu0 %v495, 96
        %v807 = vpop.permute.xlu0 %806
        %808 = vrot.lane.b32.xlu0 %v498, 96
        %v809 = vpop.permute.xlu0 %808
        %v814 = vmul.f32 %v775, %v803
        %v815 = vmul.f32 %v777, %v805
        %v816 = vmul.f32 %v779, %v807
        %v817 = vmul.f32 %v781, %v809
        %822 = vrot.lane.b32.xlu0 %v651, 96
        %v823 = vpop.permute.xlu0 %822
        %824 = vrot.lane.b32.xlu0 %v654, 96
        %v825 = vpop.permute.xlu0 %824
        %826 = vrot.lane.b32.xlu0 %v659, 96
        %v827 = vpop.permute.xlu0 %826
        %828 = vrot.lane.b32.xlu0 %v662, 96
        %v829 = vpop.permute.xlu0 %828
        %v834 = vmul.f32 %v787, %v823
        %v835 = vmul.f32 %v789, %v825
        %v836 = vmul.f32 %v791, %v827
        %v837 = vmul.f32 %v793, %v829
        %v838 = vadd.f32 %v814, %v834
        %v839 = vadd.f32 %v815, %v835
        %v840 = vadd.f32 %v816, %v836
        %v841 = vadd.f32 %v817, %v837
        %v842 = vld [vmem:[%s261 + $0x4] sm:$0xf]
        %v843 = vld [vmem:[%s261 + $0x14] sm:$0xf]
        %v844 = vld [vmem:[%s261 + $0x24] sm:$0xf]
        %v845 = vld [vmem:[%s261 + $0x34] sm:$0xf]
        %v850 = vunpack.c.l.b16 %v842
        %v851 = vunpack.c.l.b16 %v843
        %v852 = vunpack.c.l.b16 %v844
        %v853 = vunpack.c.l.b16 %v845
        %v854 = vpack.c.b16 %v851, %v850
        %v855 = vpack.c.b16 %v853, %v852
        %v857 = vsel %vm445, %v854, 0
        %v860 = vsel %vm445, %v855, 0
        %862 = vmatprep.subr.bf16.mxu0 0
        %863 = vmatpush1.bf16.msra.mxu0 %v437
        %864 = vmatprep.subr.bf16.mxu0 0
        %865 = vmatpush1.bf16.msra.mxu0 %v438
        %866 = vmatprep.subr.bf16.mxu0 0
        %867 = vmatpush1.bf16.msra.mxu0 %v439
        %868 = vmatprep.subr.bf16.mxu0 0
        %869 = vmatpush1.bf16.msra.mxu0 %v440
        %870 = vmatprep.subr.bf16.mxu0 0
        %871 = vmatpush1.bf16.msra.mxu0 0
        %872 = vmatprep.subr.bf16.mxu0 0
        %873 = vmatpush1.bf16.msra.mxu0 0
        %874 = vmatprep.subr.bf16.mxu0 0
        %875 = vmatpush1.bf16.msra.mxu0 0
        %876 = vmatprep.subr.bf16.mxu0 0
        %877 = vmatpush1.bf16.msra.mxu0 0
        %878 = vmatprep.subr.bf16.mxu0 0
        %879 = vmatpush1.bf16.msra.mxu0 0
        %880 = vmatprep.subr.bf16.mxu0 0
        %881 = vmatpush1.bf16.msra.mxu0 0
        %882 = vmatprep.subr.bf16.mxu0 0
        %883 = vmatpush1.bf16.msra.mxu0 0
        %884 = vmatprep.subr.bf16.mxu0 0
        %885 = vmatpush1.bf16.msra.mxu0 0
        %886 = vmatprep.subr.bf16.mxu0 0
        %887 = vmatpush1.bf16.msra.mxu0 0
        %888 = vmatprep.subr.bf16.mxu0 0
        %889 = vmatpush1.bf16.msra.mxu0 0
        %890 = vmatprep.subr.bf16.mxu0 0
        %891 = vmatpush1.bf16.msra.mxu0 0
        %892 = vmatprep.subr.bf16.mxu0 0
        %893 = vmatpush1.bf16.msra.mxu0 0
        %894 = vmatprep.mubr.bf16.mxu0 0
        %895 = vmatmul.mubr.bf16.gmra.mrb[0].mxu0 %v857
        %v896 = vpop.f32.mrb[0].mxu0
        %v897 = vadd.f32 0.0, %v896
        %v898 = vpop.f32.mrb[0].mxu0
        %v899 = vpop.f32.mrb[0].mxu0
        %v900 = vadd.f32 0.0, %v899
        %v901 = vpop.f32.mrb[0].mxu0
        %902 = vmatprep.mubr.bf16.mxu0 0
        %903 = vmatmul.mubr.bf16.gmra.mrb[0].mxu0 %v860
        %v904 = vpop.f32.mrb[0].mxu0
        %v905 = vadd.f32 0.0, %v904
        %v906 = vpop.f32.mrb[0].mxu0
        %v907 = vpop.f32.mrb[0].mxu0
        %v908 = vadd.f32 0.0, %v907
        %v909 = vpop.f32.mrb[0].mxu0
        %910 = vdwg.mxu0
        %v911 = vmul.f32 %v385, %v897
        %v912 = vmul.f32 %v388, %v900
        %v913 = vmul.f32 %v393, %v905
        %v914 = vmul.f32 %v396, %v908
        %v916 = vsel %vm343, %v911, 0
        %v919 = vsel %vm343, %v912, 0
        %v922 = vsel %vm343, %v913, 0
        %v925 = vsel %vm343, %v914, 0
        %927 = vmatprep.subr.mxu0 0.0
        %928 = vmatpush1.msra.mxu0 %v505
        %929 = vmatprep.subr.mxu0 0.0
        %930 = vmatpush1.msra.mxu0 %v506
        %931 = vmatprep.subr.mxu0 0.0
        %932 = vmatpush1.msra.mxu0 %v507
        %933 = vmatprep.subr.mxu0 0.0
        %934 = vmatpush1.msra.mxu0 %v508
        %935 = vmatprep.subr.mxu0 0.0
        %936 = vmatpush1.msra.mxu0 0.0
        %937 = vmatprep.subr.mxu0 0.0
        %938 = vmatpush1.msra.mxu0 0.0
        %939 = vmatprep.subr.mxu0 0.0
        %940 = vmatpush1.msra.mxu0 0.0
        %941 = vmatprep.subr.mxu0 0.0
        %942 = vmatpush1.msra.mxu0 0.0
        %943 = vmatprep.subr.mxu0 0.0
        %944 = vmatpush1.msra.mxu0 0.0
        %945 = vmatprep.subr.mxu0 0.0
        %946 = vmatpush1.msra.mxu0 0.0
        %947 = vmatprep.subr.mxu0 0.0
        %948 = vmatpush1.msra.mxu0 0.0
        %949 = vmatprep.subr.mxu0 0.0
        %950 = vmatpush1.msra.mxu0 0.0
        %951 = vmatprep.subr.mxu0 0.0
        %952 = vmatpush1.msra.mxu0 0.0
        %953 = vmatprep.subr.mxu0 0.0
        %954 = vmatpush1.msra.mxu0 0.0
        %955 = vmatprep.subr.mxu0 0.0
        %956 = vmatpush1.msra.mxu0 0.0
        %957 = vmatprep.subr.mxu0 0.0
        %958 = vmatpush1.msra.mxu0 0.0
        %959 = vmatprep.subr.mxu0 0.0
        %960 = vmatpush1.msra.mxu0 0.0
        %961 = vmatprep.subr.mxu0 0.0
        %962 = vmatpush1.msra.mxu0 0.0
        %963 = vmatprep.subr.mxu0 0.0
        %964 = vmatpush1.msra.mxu0 0.0
        %965 = vmatprep.subr.mxu0 0.0
        %966 = vmatpush1.msra.mxu0 0.0
        %967 = vmatprep.subr.mxu0 0.0
        %968 = vmatpush1.msra.mxu0 0.0
        %969 = vmatprep.subr.mxu0 0.0
        %970 = vmatpush1.msra.mxu0 0.0
        %971 = vmatprep.subr.mxu0 0.0
        %972 = vmatpush1.msra.mxu0 0.0
        %973 = vmatprep.subr.mxu0 0.0
        %974 = vmatpush1.msra.mxu0 0.0
        %975 = vmatprep.subr.mxu0 0.0
        %976 = vmatpush1.msra.mxu0 0.0
        %977 = vmatprep.subr.mxu0 0.0
        %978 = vmatpush1.msra.mxu0 0.0
        %979 = vmatprep.subr.mxu0 0.0
        %980 = vmatpush1.msra.mxu0 0.0
        %981 = vmatprep.subr.mxu0 0.0
        %982 = vmatpush1.msra.mxu0 0.0
        %983 = vmatprep.subr.mxu0 0.0
        %984 = vmatpush1.msra.mxu0 0.0
        %985 = vmatprep.subr.mxu0 0.0
        %986 = vmatpush1.msra.mxu0 0.0
        %987 = vmatprep.subr.mxu0 0.0
        %988 = vmatpush1.msra.mxu0 0.0
        %989 = vmatprep.subr.mxu0 0.0
        %990 = vmatpush1.msra.mxu0 0.0
        %991 = vmatprep.mubr.f32.mxu0 0.0
        %992 = vmatmul.mubr.f32.gmra.mrb[0].mxu0 %v916
        %v993 = vpop.f32.mrb[0].mxu0
        %v994 = vadd.f32 0.0, %v993
        %v995 = vpop.f32.mrb[0].mxu0
        %996 = vmatprep.mubr.f32.mxu0 0.0
        %997 = vmatmul.mubr.f32.gmra.mrb[0].mxu0 %v919
        %v998 = vpop.f32.mrb[0].mxu0
        %v999 = vadd.f32 0.0, %v998
        %v1000 = vpop.f32.mrb[0].mxu0
        %1001 = vmatprep.mubr.f32.mxu0 0.0
        %1002 = vmatmul.mubr.f32.gmra.mrb[0].mxu0 %v922
        %v1003 = vpop.f32.mrb[0].mxu0
        %v1004 = vadd.f32 0.0, %v1003
        %v1005 = vpop.f32.mrb[0].mxu0
        %1006 = vmatprep.mubr.f32.mxu0 0.0
        %1007 = vmatmul.mubr.f32.gmra.mrb[0].mxu0 %v925
        %v1008 = vpop.f32.mrb[0].mxu0
        %v1009 = vadd.f32 0.0, %v1008
        %v1010 = vpop.f32.mrb[0].mxu0
        %1011 = vdwg.mxu0
        %v1012 = vmax.f32 %v766, %v994
        %v1013 = vmax.f32 %v767, %v999
        %v1014 = vmax.f32 %v768, %v1004
        %v1015 = vmax.f32 %v769, %v1009
        %v1016 = vsub.f32 %v766, %v1012
        %v1017 = vsub.f32 %v767, %v1013
        %v1018 = vsub.f32 %v768, %v1014
        %v1019 = vsub.f32 %v769, %v1015
        %v1020 = vmul.f32 %v1016, 1.442695
        %v1021 = vpow.pop %v1020
        %v1022 = vmul.f32 %v1017, 1.442695
        %v1023 = vpow.pop %v1022
        %v1024 = vmul.f32 %v1018, 1.442695
        %v1025 = vpow.pop %v1024
        %v1026 = vmul.f32 %v1019, 1.442695
        %v1027 = vpow.pop %v1026
        %v1028 = vsub.f32 %v994, %v1012
        %v1029 = vsub.f32 %v999, %v1013
        %v1030 = vsub.f32 %v1004, %v1014
        %v1031 = vsub.f32 %v1009, %v1015
        %v1032 = vmul.f32 %v1028, 1.442695
        %v1033 = vpow.pop %v1032
        %v1034 = vmul.f32 %v1029, 1.442695
        %v1035 = vpow.pop %v1034
        %v1036 = vmul.f32 %v1030, 1.442695
        %v1037 = vpow.pop %v1036
        %v1038 = vmul.f32 %v1031, 1.442695
        %v1039 = vpow.pop %v1038
        %v1040 = vmul.f32 %v1021, %v794
        %v1041 = vmul.f32 %v1023, %v795
        %v1042 = vmul.f32 %v1025, %v796
        %v1043 = vmul.f32 %v1027, %v797
        %v1044 = vadd.f32 %v1040, %v1033
        %v1045 = vadd.f32 %v1041, %v1035
        %v1046 = vadd.f32 %v1042, %v1037
        %v1047 = vadd.f32 %v1043, %v1039
        %v1048 = vmul.f32 %v1021, %v838
        %v1049 = vmul.f32 %v1023, %v839
        %v1050 = vmul.f32 %v1025, %v840
        %v1051 = vmul.f32 %v1027, %v841
        %1056 = vrot.lane.b32.xlu0 %v897, 96
        %v1057 = vpop.permute.xlu0 %1056
        %1058 = vrot.lane.b32.xlu0 %v900, 96
        %v1059 = vpop.permute.xlu0 %1058
        %1060 = vrot.lane.b32.xlu0 %v905, 96
        %v1061 = vpop.permute.xlu0 %1060
        %1062 = vrot.lane.b32.xlu0 %v908, 96
        %v1063 = vpop.permute.xlu0 %1062
        %v1068 = vmul.f32 %v1033, %v1057
        %v1069 = vmul.f32 %v1035, %v1059
        %v1070 = vmul.f32 %v1037, %v1061
        %v1071 = vmul.f32 %v1039, %v1063
        %v1072 = vadd.f32 %v1048, %v1068
        %v1073 = vadd.f32 %v1049, %v1069
        %v1074 = vadd.f32 %v1050, %v1070
        %v1075 = vadd.f32 %v1051, %v1071
        %1076 = vrot.lane.b32.xlu0 %v854, 64
        %v1077 = vpop.permute.xlu0 %1076
        %1078 = vrot.lane.b32.xlu0 %v855, 64
        %v1079 = vpop.permute.xlu0 %1078
        %v1081 = vsel %vm445, %v1077, 0
        %v1084 = vsel %vm445, %v1079, 0
        %1086 = vmatprep.subr.bf16.mxu0 0
        %1087 = vmatpush1.bf16.msra.mxu0 %v437
        %1088 = vmatprep.subr.bf16.mxu0 0
        %1089 = vmatpush1.bf16.msra.mxu0 %v438
        %1090 = vmatprep.subr.bf16.mxu0 0
        %1091 = vmatpush1.bf16.msra.mxu0 %v439
        %1092 = vmatprep.subr.bf16.mxu0 0
        %1093 = vmatpush1.bf16.msra.mxu0 %v440
        %1094 = vmatprep.subr.bf16.mxu0 0
        %1095 = vmatpush1.bf16.msra.mxu0 0
        %1096 = vmatprep.subr.bf16.mxu0 0
        %1097 = vmatpush1.bf16.msra.mxu0 0
        %1098 = vmatprep.subr.bf16.mxu0 0
        %1099 = vmatpush1.bf16.msra.mxu0 0
        %1100 = vmatprep.subr.bf16.mxu0 0
        %1101 = vmatpush1.bf16.msra.mxu0 0
        %1102 = vmatprep.subr.bf16.mxu0 0
        %1103 = vmatpush1.bf16.msra.mxu0 0
        %1104 = vmatprep.subr.bf16.mxu0 0
        %1105 = vmatpush1.bf16.msra.mxu0 0
        %1106 = vmatprep.subr.bf16.mxu0 0
        %1107 = vmatpush1.bf16.msra.mxu0 0
        %1108 = vmatprep.subr.bf16.mxu0 0
        %1109 = vmatpush1.bf16.msra.mxu0 0
        %1110 = vmatprep.subr.bf16.mxu0 0
        %1111 = vmatpush1.bf16.msra.mxu0 0
        %1112 = vmatprep.subr.bf16.mxu0 0
        %1113 = vmatpush1.bf16.msra.mxu0 0
        %1114 = vmatprep.subr.bf16.mxu0 0
        %1115 = vmatpush1.bf16.msra.mxu0 0
        %1116 = vmatprep.subr.bf16.mxu0 0
        %1117 = vmatpush1.bf16.msra.mxu0 0
        %1118 = vmatprep.mubr.bf16.mxu0 0
        %1119 = vmatmul.mubr.bf16.gmra.mrb[0].mxu0 %v1081
        %v1120 = vpop.f32.mrb[0].mxu0
        %v1121 = vadd.f32 0.0, %v1120
        %v1122 = vpop.f32.mrb[0].mxu0
        %v1123 = vpop.f32.mrb[0].mxu0
        %v1124 = vadd.f32 0.0, %v1123
        %v1125 = vpop.f32.mrb[0].mxu0
        %1126 = vmatprep.mubr.bf16.mxu0 0
        %1127 = vmatmul.mubr.bf16.gmra.mrb[0].mxu0 %v1084
        %v1128 = vpop.f32.mrb[0].mxu0
        %v1129 = vadd.f32 0.0, %v1128
        %v1130 = vpop.f32.mrb[0].mxu0
        %v1131 = vpop.f32.mrb[0].mxu0
        %v1132 = vadd.f32 0.0, %v1131
        %v1133 = vpop.f32.mrb[0].mxu0
        %1134 = vdwg.mxu0
        %v1135 = vmul.f32 %v385, %v1121
        %v1136 = vmul.f32 %v388, %v1124
        %v1137 = vmul.f32 %v393, %v1129
        %v1138 = vmul.f32 %v396, %v1132
        %v1140 = vsel %vm343, %v1135, 0
        %v1143 = vsel %vm343, %v1136, 0
        %v1146 = vsel %vm343, %v1137, 0
        %v1149 = vsel %vm343, %v1138, 0
        %1151 = vmatprep.subr.mxu0 0.0
        %1152 = vmatpush1.msra.mxu0 %v505
        %1153 = vmatprep.subr.mxu0 0.0
        %1154 = vmatpush1.msra.mxu0 %v506
        %1155 = vmatprep.subr.mxu0 0.0
        %1156 = vmatpush1.msra.mxu0 %v507
        %1157 = vmatprep.subr.mxu0 0.0
        %1158 = vmatpush1.msra.mxu0 %v508
        %1159 = vmatprep.subr.mxu0 0.0
        %1160 = vmatpush1.msra.mxu0 0.0
        %1161 = vmatprep.subr.mxu0 0.0
        %1162 = vmatpush1.msra.mxu0 0.0
        %1163 = vmatprep.subr.mxu0 0.0
        %1164 = vmatpush1.msra.mxu0 0.0
        %1165 = vmatprep.subr.mxu0 0.0
        %1166 = vmatpush1.msra.mxu0 0.0
        %1167 = vmatprep.subr.mxu0 0.0
        %1168 = vmatpush1.msra.mxu0 0.0
        %1169 = vmatprep.subr.mxu0 0.0
        %1170 = vmatpush1.msra.mxu0 0.0
        %1171 = vmatprep.subr.mxu0 0.0
        %1172 = vmatpush1.msra.mxu0 0.0
        %1173 = vmatprep.subr.mxu0 0.0
        %1174 = vmatpush1.msra.mxu0 0.0
        %1175 = vmatprep.subr.mxu0 0.0
        %1176 = vmatpush1.msra.mxu0 0.0
        %1177 = vmatprep.subr.mxu0 0.0
        %1178 = vmatpush1.msra.mxu0 0.0
        %1179 = vmatprep.subr.mxu0 0.0
        %1180 = vmatpush1.msra.mxu0 0.0
        %1181 = vmatprep.subr.mxu0 0.0
        %1182 = vmatpush1.msra.mxu0 0.0
        %1183 = vmatprep.subr.mxu0 0.0
        %1184 = vmatpush1.msra.mxu0 0.0
        %1185 = vmatprep.subr.mxu0 0.0
        %1186 = vmatpush1.msra.mxu0 0.0
        %1187 = vmatprep.subr.mxu0 0.0
        %1188 = vmatpush1.msra.mxu0 0.0
        %1189 = vmatprep.subr.mxu0 0.0
        %1190 = vmatpush1.msra.mxu0 0.0
        %1191 = vmatprep.subr.mxu0 0.0
        %1192 = vmatpush1.msra.mxu0 0.0
        %1193 = vmatprep.subr.mxu0 0.0
        %1194 = vmatpush1.msra.mxu0 0.0
        %1195 = vmatprep.subr.mxu0 0.0
        %1196 = vmatpush1.msra.mxu0 0.0
        %1197 = vmatprep.subr.mxu0 0.0
        %1198 = vmatpush1.msra.mxu0 0.0
        %1199 = vmatprep.subr.mxu0 0.0
        %1200 = vmatpush1.msra.mxu0 0.0
        %1201 = vmatprep.subr.mxu0 0.0
        %1202 = vmatpush1.msra.mxu0 0.0
        %1203 = vmatprep.subr.mxu0 0.0
        %1204 = vmatpush1.msra.mxu0 0.0
        %1205 = vmatprep.subr.mxu0 0.0
        %1206 = vmatpush1.msra.mxu0 0.0
        %1207 = vmatprep.subr.mxu0 0.0
        %1208 = vmatpush1.msra.mxu0 0.0
        %1209 = vmatprep.subr.mxu0 0.0
        %1210 = vmatpush1.msra.mxu0 0.0
        %1211 = vmatprep.subr.mxu0 0.0
        %1212 = vmatpush1.msra.mxu0 0.0
        %1213 = vmatprep.subr.mxu0 0.0
        %1214 = vmatpush1.msra.mxu0 0.0
        %1215 = vmatprep.mubr.f32.mxu0 0.0
        %1216 = vmatmul.mubr.f32.gmra.mrb[0].mxu0 %v1140
        %v1217 = vpop.f32.mrb[0].mxu0
        %v1218 = vadd.f32 0.0, %v1217
        %v1219 = vpop.f32.mrb[0].mxu0
        %1220 = vmatprep.mubr.f32.mxu0 0.0
        %1221 = vmatmul.mubr.f32.gmra.mrb[0].mxu0 %v1143
        %v1222 = vpop.f32.mrb[0].mxu0
        %v1223 = vadd.f32 0.0, %v1222
        %v1224 = vpop.f32.mrb[0].mxu0
        %1225 = vmatprep.mubr.f32.mxu0 0.0
        %1226 = vmatmul.mubr.f32.gmra.mrb[0].mxu0 %v1146
        %v1227 = vpop.f32.mrb[0].mxu0
        %v1228 = vadd.f32 0.0, %v1227
        %v1229 = vpop.f32.mrb[0].mxu0
        %1230 = vmatprep.mubr.f32.mxu0 0.0
        %1231 = vmatmul.mubr.f32.gmra.mrb[0].mxu0 %v1149
        %v1232 = vpop.f32.mrb[0].mxu0
        %v1233 = vadd.f32 0.0, %v1232
        %v1234 = vpop.f32.mrb[0].mxu0
        %1235 = vdwg.mxu0
        %v1236 = vmax.f32 %v1012, %v1218
        %v1237 = vmax.f32 %v1013, %v1223
        %v1238 = vmax.f32 %v1014, %v1228
        %v1239 = vmax.f32 %v1015, %v1233
        %v1240 = vsub.f32 %v1012, %v1236
        %v1241 = vsub.f32 %v1013, %v1237
        %v1242 = vsub.f32 %v1014, %v1238
        %v1243 = vsub.f32 %v1015, %v1239
        %v1244 = vmul.f32 %v1240, 1.442695
        %v1245 = vpow.pop %v1244
        %v1246 = vmul.f32 %v1241, 1.442695
        %v1247 = vpow.pop %v1246
        %v1248 = vmul.f32 %v1242, 1.442695
        %v1249 = vpow.pop %v1248
        %v1250 = vmul.f32 %v1243, 1.442695
        %v1251 = vpow.pop %v1250
        %v1252 = vsub.f32 %v1218, %v1236
        %v1253 = vsub.f32 %v1223, %v1237
        %v1254 = vsub.f32 %v1228, %v1238
        %v1255 = vsub.f32 %v1233, %v1239
        %v1256 = vmul.f32 %v1252, 1.442695
        %v1257 = vpow.pop %v1256
        %v1258 = vmul.f32 %v1253, 1.442695
        %v1259 = vpow.pop %v1258
        %v1260 = vmul.f32 %v1254, 1.442695
        %v1261 = vpow.pop %v1260
        %v1262 = vmul.f32 %v1255, 1.442695
        %v1263 = vpow.pop %v1262
        %v1264 = vmul.f32 %v1245, %v1044
        %v1265 = vmul.f32 %v1247, %v1045
        %v1266 = vmul.f32 %v1249, %v1046
        %v1267 = vmul.f32 %v1251, %v1047
        %v1268 = vadd.f32 %v1264, %v1257
        %v1269 = vadd.f32 %v1265, %v1259
        %v1270 = vadd.f32 %v1266, %v1261
        %v1271 = vadd.f32 %v1267, %v1263
        %v1272 = vmul.f32 %v1245, %v1072
        %v1273 = vmul.f32 %v1247, %v1073
        %v1274 = vmul.f32 %v1249, %v1074
        %v1275 = vmul.f32 %v1251, %v1075
        %1280 = vrot.lane.b32.xlu0 %v1121, 96
        %v1281 = vpop.permute.xlu0 %1280
        %1282 = vrot.lane.b32.xlu0 %v1124, 96
        %v1283 = vpop.permute.xlu0 %1282
        %1284 = vrot.lane.b32.xlu0 %v1129, 96
        %v1285 = vpop.permute.xlu0 %1284
        %1286 = vrot.lane.b32.xlu0 %v1132, 96
        %v1287 = vpop.permute.xlu0 %1286
        %v1292 = vmul.f32 %v1257, %v1281
        %v1293 = vmul.f32 %v1259, %v1283
        %v1294 = vmul.f32 %v1261, %v1285
        %v1295 = vmul.f32 %v1263, %v1287
        %v1296 = vadd.f32 %v1272, %v1292
        %v1297 = vadd.f32 %v1273, %v1293
        %v1298 = vadd.f32 %v1274, %v1294
        %v1299 = vadd.f32 %v1275, %v1295
        %v1300 = vld [vmem:[%s261 + $0x8] sm:$0xf]
        %v1301 = vld [vmem:[%s261 + $0x18] sm:$0xf]
        %v1302 = vld [vmem:[%s261 + $0x28] sm:$0xf]
        %v1303 = vld [vmem:[%s261 + $0x38] sm:$0xf]
        %v1308 = vunpack.c.l.b16 %v1300
        %v1309 = vunpack.c.l.b16 %v1301
        %v1310 = vunpack.c.l.b16 %v1302
        %v1311 = vunpack.c.l.b16 %v1303
        %v1312 = vpack.c.b16 %v1309, %v1308
        %v1313 = vpack.c.b16 %v1311, %v1310
        %v1315 = vsel %vm445, %v1312, 0
        %v1318 = vsel %vm445, %v1313, 0
        %1320 = vmatprep.subr.bf16.mxu0 0
        %1321 = vmatpush1.bf16.msra.mxu0 %v437
        %1322 = vmatprep.subr.bf16.mxu0 0
        %1323 = vmatpush1.bf16.msra.mxu0 %v438
        %1324 = vmatprep.subr.bf16.mxu0 0
        %1325 = vmatpush1.bf16.msra.mxu0 %v439
        %1326 = vmatprep.subr.bf16.mxu0 0
        %1327 = vmatpush1.bf16.msra.mxu0 %v440
        %1328 = vmatprep.subr.bf16.mxu0 0
        %1329 = vmatpush1.bf16.msra.mxu0 0
        %1330 = vmatprep.subr.bf16.mxu0 0
        %1331 = vmatpush1.bf16.msra.mxu0 0
        %1332 = vmatprep.subr.bf16.mxu0 0
        %1333 = vmatpush1.bf16.msra.mxu0 0
        %1334 = vmatprep.subr.bf16.mxu0 0
        %1335 = vmatpush1.bf16.msra.mxu0 0
        %1336 = vmatprep.subr.bf16.mxu0 0
        %1337 = vmatpush1.bf16.msra.mxu0 0
        %1338 = vmatprep.subr.bf16.mxu0 0
        %1339 = vmatpush1.bf16.msra.mxu0 0
        %1340 = vmatprep.subr.bf16.mxu0 0
        %1341 = vmatpush1.bf16.msra.mxu0 0
        %1342 = vmatprep.subr.bf16.mxu0 0
        %1343 = vmatpush1.bf16.msra.mxu0 0
        %1344 = vmatprep.subr.bf16.mxu0 0
        %1345 = vmatpush1.bf16.msra.mxu0 0
        %1346 = vmatprep.subr.bf16.mxu0 0
        %1347 = vmatpush1.bf16.msra.mxu0 0
        %1348 = vmatprep.subr.bf16.mxu0 0
        %1349 = vmatpush1.bf16.msra.mxu0 0
        %1350 = vmatprep.subr.bf16.mxu0 0
        %1351 = vmatpush1.bf16.msra.mxu0 0
        %1352 = vmatprep.mubr.bf16.mxu0 0
        %1353 = vmatmul.mubr.bf16.gmra.mrb[0].mxu0 %v1315
        %v1354 = vpop.f32.mrb[0].mxu0
        %v1355 = vadd.f32 0.0, %v1354
        %v1356 = vpop.f32.mrb[0].mxu0
        %v1357 = vpop.f32.mrb[0].mxu0
        %v1358 = vadd.f32 0.0, %v1357
        %v1359 = vpop.f32.mrb[0].mxu0
        %1360 = vmatprep.mubr.bf16.mxu0 0
        %1361 = vmatmul.mubr.bf16.gmra.mrb[0].mxu0 %v1318
        %v1362 = vpop.f32.mrb[0].mxu0
        %v1363 = vadd.f32 0.0, %v1362
        %v1364 = vpop.f32.mrb[0].mxu0
        %v1365 = vpop.f32.mrb[0].mxu0
        %v1366 = vadd.f32 0.0, %v1365
        %v1367 = vpop.f32.mrb[0].mxu0
        %1368 = vdwg.mxu0
        %v1369 = vmul.f32 %v385, %v1355
        %v1370 = vmul.f32 %v388, %v1358
        %v1371 = vmul.f32 %v393, %v1363
        %v1372 = vmul.f32 %v396, %v1366
        %v1374 = vsel %vm343, %v1369, 0
        %v1377 = vsel %vm343, %v1370, 0
        %v1380 = vsel %vm343, %v1371, 0
        %v1383 = vsel %vm343, %v1372, 0
        %1385 = vmatprep.subr.mxu0 0.0
        %1386 = vmatpush1.msra.mxu0 %v505
        %1387 = vmatprep.subr.mxu0 0.0
        %1388 = vmatpush1.msra.mxu0 %v506
        %1389 = vmatprep.subr.mxu0 0.0
        %1390 = vmatpush1.msra.mxu0 %v507
        %1391 = vmatprep.subr.mxu0 0.0
        %1392 = vmatpush1.msra.mxu0 %v508
        %1393 = vmatprep.subr.mxu0 0.0
        %1394 = vmatpush1.msra.mxu0 0.0
        %1395 = vmatprep.subr.mxu0 0.0
        %1396 = vmatpush1.msra.mxu0 0.0
        %1397 = vmatprep.subr.mxu0 0.0
        %1398 = vmatpush1.msra.mxu0 0.0
        %1399 = vmatprep.subr.mxu0 0.0
        %1400 = vmatpush1.msra.mxu0 0.0
        %1401 = vmatprep.subr.mxu0 0.0
        %1402 = vmatpush1.msra.mxu0 0.0
        %1403 = vmatprep.subr.mxu0 0.0
        %1404 = vmatpush1.msra.mxu0 0.0
        %1405 = vmatprep.subr.mxu0 0.0
        %1406 = vmatpush1.msra.mxu0 0.0
        %1407 = vmatprep.subr.mxu0 0.0
        %1408 = vmatpush1.msra.mxu0 0.0
        %1409 = vmatprep.subr.mxu0 0.0
        %1410 = vmatpush1.msra.mxu0 0.0
        %1411 = vmatprep.subr.mxu0 0.0
        %1412 = vmatpush1.msra.mxu0 0.0
        %1413 = vmatprep.subr.mxu0 0.0
        %1414 = vmatpush1.msra.mxu0 0.0
        %1415 = vmatprep.subr.mxu0 0.0
        %1416 = vmatpush1.msra.mxu0 0.0
        %1417 = vmatprep.subr.mxu0 0.0
        %1418 = vmatpush1.msra.mxu0 0.0
        %1419 = vmatprep.subr.mxu0 0.0
        %1420 = vmatpush1.msra.mxu0 0.0
        %1421 = vmatprep.subr.mxu0 0.0
        %1422 = vmatpush1.msra.mxu0 0.0
        %1423 = vmatprep.subr.mxu0 0.0
        %1424 = vmatpush1.msra.mxu0 0.0
        %1425 = vmatprep.subr.mxu0 0.0
        %1426 = vmatpush1.msra.mxu0 0.0
        %1427 = vmatprep.subr.mxu0 0.0
        %1428 = vmatpush1.msra.mxu0 0.0
        %1429 = vmatprep.subr.mxu0 0.0
        %1430 = vmatpush1.msra.mxu0 0.0
        %1431 = vmatprep.subr.mxu0 0.0
        %1432 = vmatpush1.msra.mxu0 0.0
        %1433 = vmatprep.subr.mxu0 0.0
        %1434 = vmatpush1.msra.mxu0 0.0
        %1435 = vmatprep.subr.mxu0 0.0
        %1436 = vmatpush1.msra.mxu0 0.0
        %1437 = vmatprep.subr.mxu0 0.0
        %1438 = vmatpush1.msra.mxu0 0.0
        %1439 = vmatprep.subr.mxu0 0.0
        %1440 = vmatpush1.msra.mxu0 0.0
        %1441 = vmatprep.subr.mxu0 0.0
        %1442 = vmatpush1.msra.mxu0 0.0
        %1443 = vmatprep.subr.mxu0 0.0
        %1444 = vmatpush1.msra.mxu0 0.0
        %1445 = vmatprep.subr.mxu0 0.0
        %1446 = vmatpush1.msra.mxu0 0.0
        %1447 = vmatprep.subr.mxu0 0.0
        %1448 = vmatpush1.msra.mxu0 0.0
        %1449 = vmatprep.mubr.f32.mxu0 0.0
        %1450 = vmatmul.mubr.f32.gmra.mrb[0].mxu0 %v1374
        %v1451 = vpop.f32.mrb[0].mxu0
        %v1452 = vadd.f32 0.0, %v1451
        %v1453 = vpop.f32.mrb[0].mxu0
        %1454 = vmatprep.mubr.f32.mxu0 0.0
        %1455 = vmatmul.mubr.f32.gmra.mrb[0].mxu0 %v1377
        %v1456 = vpop.f32.mrb[0].mxu0
        %v1457 = vadd.f32 0.0, %v1456
        %v1458 = vpop.f32.mrb[0].mxu0
        %1459 = vmatprep.mubr.f32.mxu0 0.0
        %1460 = vmatmul.mubr.f32.gmra.mrb[0].mxu0 %v1380
        %v1461 = vpop.f32.mrb[0].mxu0
        %v1462 = vadd.f32 0.0, %v1461
        %v1463 = vpop.f32.mrb[0].mxu0
        %1464 = vmatprep.mubr.f32.mxu0 0.0
        %1465 = vmatmul.mubr.f32.gmra.mrb[0].mxu0 %v1383
        %v1466 = vpop.f32.mrb[0].mxu0
        %v1467 = vadd.f32 0.0, %v1466
        %v1468 = vpop.f32.mrb[0].mxu0
        %1469 = vdwg.mxu0
        %v1470 = vmax.f32 %v1236, %v1452
        %v1471 = vmax.f32 %v1237, %v1457
        %v1472 = vmax.f32 %v1238, %v1462
        %v1473 = vmax.f32 %v1239, %v1467
        %v1474 = vsub.f32 %v1236, %v1470
        %v1475 = vsub.f32 %v1237, %v1471
        %v1476 = vsub.f32 %v1238, %v1472
        %v1477 = vsub.f32 %v1239, %v1473
        %v1478 = vmul.f32 %v1474, 1.442695
        %v1479 = vpow.pop %v1478
        %v1480 = vmul.f32 %v1475, 1.442695
        %v1481 = vpow.pop %v1480
        %v1482 = vmul.f32 %v1476, 1.442695
        %v1483 = vpow.pop %v1482
        %v1484 = vmul.f32 %v1477, 1.442695
        %v1485 = vpow.pop %v1484
        %v1486 = vsub.f32 %v1452, %v1470
        %v1487 = vsub.f32 %v1457, %v1471
        %v1488 = vsub.f32 %v1462, %v1472
        %v1489 = vsub.f32 %v1467, %v1473
        %v1490 = vmul.f32 %v1486, 1.442695
        %v1491 = vpow.pop %v1490
        %v1492 = vmul.f32 %v1487, 1.442695
        %v1493 = vpow.pop %v1492
        %v1494 = vmul.f32 %v1488, 1.442695
        %v1495 = vpow.pop %v1494
        %v1496 = vmul.f32 %v1489, 1.442695
        %v1497 = vpow.pop %v1496
        %v1498 = vmul.f32 %v1479, %v1268
        %v1499 = vmul.f32 %v1481, %v1269
        %v1500 = vmul.f32 %v1483, %v1270
        %v1501 = vmul.f32 %v1485, %v1271
        %v1502 = vadd.f32 %v1498, %v1491
        %v1503 = vadd.f32 %v1499, %v1493
        %v1504 = vadd.f32 %v1500, %v1495
        %v1505 = vadd.f32 %v1501, %v1497
        %v1506 = vmul.f32 %v1479, %v1296
        %v1507 = vmul.f32 %v1481, %v1297
        %v1508 = vmul.f32 %v1483, %v1298
        %v1509 = vmul.f32 %v1485, %v1299
        %1514 = vrot.lane.b32.xlu0 %v1355, 96
        %v1515 = vpop.permute.xlu0 %1514
        %1516 = vrot.lane.b32.xlu0 %v1358, 96
        %v1517 = vpop.permute.xlu0 %1516
        %1518 = vrot.lane.b32.xlu0 %v1363, 96
        %v1519 = vpop.permute.xlu0 %1518
        %1520 = vrot.lane.b32.xlu0 %v1366, 96
        %v1521 = vpop.permute.xlu0 %1520
        %v1526 = vmul.f32 %v1491, %v1515
        %v1527 = vmul.f32 %v1493, %v1517
        %v1528 = vmul.f32 %v1495, %v1519
        %v1529 = vmul.f32 %v1497, %v1521
        %v1530 = vadd.f32 %v1506, %v1526
        %v1531 = vadd.f32 %v1507, %v1527
        %v1532 = vadd.f32 %v1508, %v1528
        %v1533 = vadd.f32 %v1509, %v1529
        %1534 = vrot.lane.b32.xlu0 %v1312, 64
        %v1535 = vpop.permute.xlu0 %1534
        %1536 = vrot.lane.b32.xlu0 %v1313, 64
        %v1537 = vpop.permute.xlu0 %1536
        %v1539 = vsel %vm445, %v1535, 0
        %v1542 = vsel %vm445, %v1537, 0
        %1544 = vmatprep.subr.bf16.mxu0 0
        %1545 = vmatpush1.bf16.msra.mxu0 %v437
        %1546 = vmatprep.subr.bf16.mxu0 0
        %1547 = vmatpush1.bf16.msra.mxu0 %v438
        %1548 = vmatprep.subr.bf16.mxu0 0
        %1549 = vmatpush1.bf16.msra.mxu0 %v439
        %1550 = vmatprep.subr.bf16.mxu0 0
        %1551 = vmatpush1.bf16.msra.mxu0 %v440
        %1552 = vmatprep.subr.bf16.mxu0 0
        %1553 = vmatpush1.bf16.msra.mxu0 0
        %1554 = vmatprep.subr.bf16.mxu0 0
        %1555 = vmatpush1.bf16.msra.mxu0 0
        %1556 = vmatprep.subr.bf16.mxu0 0
        %1557 = vmatpush1.bf16.msra.mxu0 0
        %1558 = vmatprep.subr.bf16.mxu0 0
        %1559 = vmatpush1.bf16.msra.mxu0 0
        %1560 = vmatprep.subr.bf16.mxu0 0
        %1561 = vmatpush1.bf16.msra.mxu0 0
        %1562 = vmatprep.subr.bf16.mxu0 0
        %1563 = vmatpush1.bf16.msra.mxu0 0
        %1564 = vmatprep.subr.bf16.mxu0 0
        %1565 = vmatpush1.bf16.msra.mxu0 0
        %1566 = vmatprep.subr.bf16.mxu0 0
        %1567 = vmatpush1.bf16.msra.mxu0 0
        %1568 = vmatprep.subr.bf16.mxu0 0
        %1569 = vmatpush1.bf16.msra.mxu0 0
        %1570 = vmatprep.subr.bf16.mxu0 0
        %1571 = vmatpush1.bf16.msra.mxu0 0
        %1572 = vmatprep.subr.bf16.mxu0 0
        %1573 = vmatpush1.bf16.msra.mxu0 0
        %1574 = vmatprep.subr.bf16.mxu0 0
        %1575 = vmatpush1.bf16.msra.mxu0 0
        %1576 = vmatprep.mubr.bf16.mxu0 0
        %1577 = vmatmul.mubr.bf16.gmra.mrb[0].mxu0 %v1539
        %v1578 = vpop.f32.mrb[0].mxu0
        %v1579 = vadd.f32 0.0, %v1578
        %v1580 = vpop.f32.mrb[0].mxu0
        %v1581 = vpop.f32.mrb[0].mxu0
        %v1582 = vadd.f32 0.0, %v1581
        %v1583 = vpop.f32.mrb[0].mxu0
        %1584 = vmatprep.mubr.bf16.mxu0 0
        %1585 = vmatmul.mubr.bf16.gmra.mrb[0].mxu0 %v1542
        %v1586 = vpop.f32.mrb[0].mxu0
        %v1587 = vadd.f32 0.0, %v1586
        %v1588 = vpop.f32.mrb[0].mxu0
        %v1589 = vpop.f32.mrb[0].mxu0
        %v1590 = vadd.f32 0.0, %v1589
        %v1591 = vpop.f32.mrb[0].mxu0
        %1592 = vdwg.mxu0
        %v1593 = vmul.f32 %v385, %v1579
        %v1594 = vmul.f32 %v388, %v1582
        %v1595 = vmul.f32 %v393, %v1587
        %v1596 = vmul.f32 %v396, %v1590
        %v1598 = vsel %vm343, %v1593, 0
        %v1601 = vsel %vm343, %v1594, 0
        %v1604 = vsel %vm343, %v1595, 0
        %v1607 = vsel %vm343, %v1596, 0
        %1609 = vmatprep.subr.mxu0 0.0
        %1610 = vmatpush1.msra.mxu0 %v505
        %1611 = vmatprep.subr.mxu0 0.0
        %1612 = vmatpush1.msra.mxu0 %v506
        %1613 = vmatprep.subr.mxu0 0.0
        %1614 = vmatpush1.msra.mxu0 %v507
        %1615 = vmatprep.subr.mxu0 0.0
        %1616 = vmatpush1.msra.mxu0 %v508
        %1617 = vmatprep.subr.mxu0 0.0
        %1618 = vmatpush1.msra.mxu0 0.0
        %1619 = vmatprep.subr.mxu0 0.0
        %1620 = vmatpush1.msra.mxu0 0.0
        %1621 = vmatprep.subr.mxu0 0.0
        %1622 = vmatpush1.msra.mxu0 0.0
        %1623 = vmatprep.subr.mxu0 0.0
        %1624 = vmatpush1.msra.mxu0 0.0
        %1625 = vmatprep.subr.mxu0 0.0
        %1626 = vmatpush1.msra.mxu0 0.0
        %1627 = vmatprep.subr.mxu0 0.0
        %1628 = vmatpush1.msra.mxu0 0.0
        %1629 = vmatprep.subr.mxu0 0.0
        %1630 = vmatpush1.msra.mxu0 0.0
        %1631 = vmatprep.subr.mxu0 0.0
        %1632 = vmatpush1.msra.mxu0 0.0
        %1633 = vmatprep.subr.mxu0 0.0
        %1634 = vmatpush1.msra.mxu0 0.0
        %1635 = vmatprep.subr.mxu0 0.0
        %1636 = vmatpush1.msra.mxu0 0.0
        %1637 = vmatprep.subr.mxu0 0.0
        %1638 = vmatpush1.msra.mxu0 0.0
        %1639 = vmatprep.subr.mxu0 0.0
        %1640 = vmatpush1.msra.mxu0 0.0
        %1641 = vmatprep.subr.mxu0 0.0
        %1642 = vmatpush1.msra.mxu0 0.0
        %1643 = vmatprep.subr.mxu0 0.0
        %1644 = vmatpush1.msra.mxu0 0.0
        %1645 = vmatprep.subr.mxu0 0.0
        %1646 = vmatpush1.msra.mxu0 0.0
        %1647 = vmatprep.subr.mxu0 0.0
        %1648 = vmatpush1.msra.mxu0 0.0
        %1649 = vmatprep.subr.mxu0 0.0
        %1650 = vmatpush1.msra.mxu0 0.0
        %1651 = vmatprep.subr.mxu0 0.0
        %1652 = vmatpush1.msra.mxu0 0.0
        %1653 = vmatprep.subr.mxu0 0.0
        %1654 = vmatpush1.msra.mxu0 0.0
        %1655 = vmatprep.subr.mxu0 0.0
        %1656 = vmatpush1.msra.mxu0 0.0
        %1657 = vmatprep.subr.mxu0 0.0
        %1658 = vmatpush1.msra.mxu0 0.0
        %1659 = vmatprep.subr.mxu0 0.0
        %1660 = vmatpush1.msra.mxu0 0.0
        %1661 = vmatprep.subr.mxu0 0.0
        %1662 = vmatpush1.msra.mxu0 0.0
        %1663 = vmatprep.subr.mxu0 0.0
        %1664 = vmatpush1.msra.mxu0 0.0
        %1665 = vmatprep.subr.mxu0 0.0
        %1666 = vmatpush1.msra.mxu0 0.0
        %1667 = vmatprep.subr.mxu0 0.0
        %1668 = vmatpush1.msra.mxu0 0.0
        %1669 = vmatprep.subr.mxu0 0.0
        %1670 = vmatpush1.msra.mxu0 0.0
        %1671 = vmatprep.subr.mxu0 0.0
        %1672 = vmatpush1.msra.mxu0 0.0
        %1673 = vmatprep.mubr.f32.mxu0 0.0
        %1674 = vmatmul.mubr.f32.gmra.mrb[0].mxu0 %v1598
        %v1675 = vpop.f32.mrb[0].mxu0
        %v1676 = vadd.f32 0.0, %v1675
        %v1677 = vpop.f32.mrb[0].mxu0
        %1678 = vmatprep.mubr.f32.mxu0 0.0
        %1679 = vmatmul.mubr.f32.gmra.mrb[0].mxu0 %v1601
        %v1680 = vpop.f32.mrb[0].mxu0
        %v1681 = vadd.f32 0.0, %v1680
        %v1682 = vpop.f32.mrb[0].mxu0
        %1683 = vmatprep.mubr.f32.mxu0 0.0
        %1684 = vmatmul.mubr.f32.gmra.mrb[0].mxu0 %v1604
        %v1685 = vpop.f32.mrb[0].mxu0
        %v1686 = vadd.f32 0.0, %v1685
        %v1687 = vpop.f32.mrb[0].mxu0
        %1688 = vmatprep.mubr.f32.mxu0 0.0
        %1689 = vmatmul.mubr.f32.gmra.mrb[0].mxu0 %v1607
        %v1690 = vpop.f32.mrb[0].mxu0
        %v1691 = vadd.f32 0.0, %v1690
        %v1692 = vpop.f32.mrb[0].mxu0
        %1693 = vdwg.mxu0
        %v1694 = vmax.f32 %v1470, %v1676
        %v1695 = vmax.f32 %v1471, %v1681
        %v1696 = vmax.f32 %v1472, %v1686
        %v1697 = vmax.f32 %v1473, %v1691
        %v1698 = vsub.f32 %v1470, %v1694
        %v1699 = vsub.f32 %v1471, %v1695
        %v1700 = vsub.f32 %v1472, %v1696
        %v1701 = vsub.f32 %v1473, %v1697
        %v1702 = vmul.f32 %v1698, 1.442695
        %v1703 = vpow.pop %v1702
        %v1704 = vmul.f32 %v1699, 1.442695
        %v1705 = vpow.pop %v1704
        %v1706 = vmul.f32 %v1700, 1.442695
        %v1707 = vpow.pop %v1706
        %v1708 = vmul.f32 %v1701, 1.442695
        %v1709 = vpow.pop %v1708
        %v1710 = vsub.f32 %v1676, %v1694
        %v1711 = vsub.f32 %v1681, %v1695
        %v1712 = vsub.f32 %v1686, %v1696
        %v1713 = vsub.f32 %v1691, %v1697
        %v1714 = vmul.f32 %v1710, 1.442695
        %v1715 = vpow.pop %v1714
        %v1716 = vmul.f32 %v1711, 1.442695
        %v1717 = vpow.pop %v1716
        %v1718 = vmul.f32 %v1712, 1.442695
        %v1719 = vpow.pop %v1718
        %v1720 = vmul.f32 %v1713, 1.442695
        %v1721 = vpow.pop %v1720
        %v1722 = vmul.f32 %v1703, %v1502
        %v1723 = vmul.f32 %v1705, %v1503
        %v1724 = vmul.f32 %v1707, %v1504
        %v1725 = vmul.f32 %v1709, %v1505
        %v1726 = vadd.f32 %v1722, %v1715
        %v1727 = vadd.f32 %v1723, %v1717
        %v1728 = vadd.f32 %v1724, %v1719
        %v1729 = vadd.f32 %v1725, %v1721
        %v1730 = vmul.f32 %v1703, %v1530
        %v1731 = vmul.f32 %v1705, %v1531
        %v1732 = vmul.f32 %v1707, %v1532
        %v1733 = vmul.f32 %v1709, %v1533
        %1738 = vrot.lane.b32.xlu0 %v1579, 96
        %v1739 = vpop.permute.xlu0 %1738
        %1740 = vrot.lane.b32.xlu0 %v1582, 96
        %v1741 = vpop.permute.xlu0 %1740
        %1742 = vrot.lane.b32.xlu0 %v1587, 96
        %v1743 = vpop.permute.xlu0 %1742
        %1744 = vrot.lane.b32.xlu0 %v1590, 96
        %v1745 = vpop.permute.xlu0 %1744
        %v1750 = vmul.f32 %v1715, %v1739
        %v1751 = vmul.f32 %v1717, %v1741
        %v1752 = vmul.f32 %v1719, %v1743
        %v1753 = vmul.f32 %v1721, %v1745
        %v1754 = vadd.f32 %v1730, %v1750
        %v1755 = vadd.f32 %v1731, %v1751
        %v1756 = vadd.f32 %v1732, %v1752
        %v1757 = vadd.f32 %v1733, %v1753
        %v1758 = vld [vmem:[%s261 + $0xc] sm:$0xf]
        %v1759 = vld [vmem:[%s261 + $0x1c] sm:$0xf]
        %v1760 = vld [vmem:[%s261 + $0x2c] sm:$0xf]
        %v1761 = vld [vmem:[%s261 + $0x3c] sm:$0xf]
        %v1766 = vunpack.c.l.b16 %v1758
        %v1767 = vunpack.c.l.b16 %v1759
        %v1768 = vunpack.c.l.b16 %v1760
        %v1769 = vunpack.c.l.b16 %v1761
        %v1770 = vpack.c.b16 %v1767, %v1766
        %v1771 = vpack.c.b16 %v1769, %v1768
        %v1773 = vsel %vm445, %v1770, 0
        %v1776 = vsel %vm445, %v1771, 0
        %1778 = vmatprep.subr.bf16.mxu0 0
        %1779 = vmatpush1.bf16.msra.mxu0 %v437
        %1780 = vmatprep.subr.bf16.mxu0 0
        %1781 = vmatpush1.bf16.msra.mxu0 %v438
        %1782 = vmatprep.subr.bf16.mxu0 0
        %1783 = vmatpush1.bf16.msra.mxu0 %v439
        %1784 = vmatprep.subr.bf16.mxu0 0
        %1785 = vmatpush1.bf16.msra.mxu0 %v440
        %1786 = vmatprep.subr.bf16.mxu0 0
        %1787 = vmatpush1.bf16.msra.mxu0 0
        %1788 = vmatprep.subr.bf16.mxu0 0
        %1789 = vmatpush1.bf16.msra.mxu0 0
        %1790 = vmatprep.subr.bf16.mxu0 0
        %1791 = vmatpush1.bf16.msra.mxu0 0
        %1792 = vmatprep.subr.bf16.mxu0 0
        %1793 = vmatpush1.bf16.msra.mxu0 0
        %1794 = vmatprep.subr.bf16.mxu0 0
        %1795 = vmatpush1.bf16.msra.mxu0 0
        %1796 = vmatprep.subr.bf16.mxu0 0
        %1797 = vmatpush1.bf16.msra.mxu0 0
        %1798 = vmatprep.subr.bf16.mxu0 0
        %1799 = vmatpush1.bf16.msra.mxu0 0
        %1800 = vmatprep.subr.bf16.mxu0 0
        %1801 = vmatpush1.bf16.msra.mxu0 0
        %1802 = vmatprep.subr.bf16.mxu0 0
        %1803 = vmatpush1.bf16.msra.mxu0 0
        %1804 = vmatprep.subr.bf16.mxu0 0
        %1805 = vmatpush1.bf16.msra.mxu0 0
        %1806 = vmatprep.subr.bf16.mxu0 0
        %1807 = vmatpush1.bf16.msra.mxu0 0
        %1808 = vmatprep.subr.bf16.mxu0 0
        %1809 = vmatpush1.bf16.msra.mxu0 0
        %1810 = vmatprep.mubr.bf16.mxu0 0
        %1811 = vmatmul.mubr.bf16.gmra.mrb[0].mxu0 %v1773
        %v1812 = vpop.f32.mrb[0].mxu0
        %v1813 = vadd.f32 0.0, %v1812
        %v1814 = vpop.f32.mrb[0].mxu0
        %v1815 = vpop.f32.mrb[0].mxu0
        %v1816 = vadd.f32 0.0, %v1815
        %v1817 = vpop.f32.mrb[0].mxu0
        %1818 = vmatprep.mubr.bf16.mxu0 0
        %1819 = vmatmul.mubr.bf16.gmra.mrb[0].mxu0 %v1776
        %v1820 = vpop.f32.mrb[0].mxu0
        %v1821 = vadd.f32 0.0, %v1820
        %v1822 = vpop.f32.mrb[0].mxu0
        %v1823 = vpop.f32.mrb[0].mxu0
        %v1824 = vadd.f32 0.0, %v1823
        %v1825 = vpop.f32.mrb[0].mxu0
        %1826 = vdwg.mxu0
        %v1827 = vmul.f32 %v385, %v1813
        %v1828 = vmul.f32 %v388, %v1816
        %v1829 = vmul.f32 %v393, %v1821
        %v1830 = vmul.f32 %v396, %v1824
        %v1832 = vsel %vm343, %v1827, 0
        %v1835 = vsel %vm343, %v1828, 0
        %v1838 = vsel %vm343, %v1829, 0
        %v1841 = vsel %vm343, %v1830, 0
        %1843 = vmatprep.subr.mxu0 0.0
        %1844 = vmatpush1.msra.mxu0 %v505
        %1845 = vmatprep.subr.mxu0 0.0
        %1846 = vmatpush1.msra.mxu0 %v506
        %1847 = vmatprep.subr.mxu0 0.0
        %1848 = vmatpush1.msra.mxu0 %v507
        %1849 = vmatprep.subr.mxu0 0.0
        %1850 = vmatpush1.msra.mxu0 %v508
        %1851 = vmatprep.subr.mxu0 0.0
        %1852 = vmatpush1.msra.mxu0 0.0
        %1853 = vmatprep.subr.mxu0 0.0
        %1854 = vmatpush1.msra.mxu0 0.0
        %1855 = vmatprep.subr.mxu0 0.0
        %1856 = vmatpush1.msra.mxu0 0.0
        %1857 = vmatprep.subr.mxu0 0.0
        %1858 = vmatpush1.msra.mxu0 0.0
        %1859 = vmatprep.subr.mxu0 0.0
        %1860 = vmatpush1.msra.mxu0 0.0
        %1861 = vmatprep.subr.mxu0 0.0
        %1862 = vmatpush1.msra.mxu0 0.0
        %1863 = vmatprep.subr.mxu0 0.0
        %1864 = vmatpush1.msra.mxu0 0.0
        %1865 = vmatprep.subr.mxu0 0.0
        %1866 = vmatpush1.msra.mxu0 0.0
        %1867 = vmatprep.subr.mxu0 0.0
        %1868 = vmatpush1.msra.mxu0 0.0
        %1869 = vmatprep.subr.mxu0 0.0
        %1870 = vmatpush1.msra.mxu0 0.0
        %1871 = vmatprep.subr.mxu0 0.0
        %1872 = vmatpush1.msra.mxu0 0.0
        %1873 = vmatprep.subr.mxu0 0.0
        %1874 = vmatpush1.msra.mxu0 0.0
        %1875 = vmatprep.subr.mxu0 0.0
        %1876 = vmatpush1.msra.mxu0 0.0
        %1877 = vmatprep.subr.mxu0 0.0
        %1878 = vmatpush1.msra.mxu0 0.0
        %1879 = vmatprep.subr.mxu0 0.0
        %1880 = vmatpush1.msra.mxu0 0.0
        %1881 = vmatprep.subr.mxu0 0.0
        %1882 = vmatpush1.msra.mxu0 0.0
        %1883 = vmatprep.subr.mxu0 0.0
        %1884 = vmatpush1.msra.mxu0 0.0
        %1885 = vmatprep.subr.mxu0 0.0
        %1886 = vmatpush1.msra.mxu0 0.0
        %1887 = vmatprep.subr.mxu0 0.0
        %1888 = vmatpush1.msra.mxu0 0.0
        %1889 = vmatprep.subr.mxu0 0.0
        %1890 = vmatpush1.msra.mxu0 0.0
        %1891 = vmatprep.subr.mxu0 0.0
        %1892 = vmatpush1.msra.mxu0 0.0
        %1893 = vmatprep.subr.mxu0 0.0
        %1894 = vmatpush1.msra.mxu0 0.0
        %1895 = vmatprep.subr.mxu0 0.0
        %1896 = vmatpush1.msra.mxu0 0.0
        %1897 = vmatprep.subr.mxu0 0.0
        %1898 = vmatpush1.msra.mxu0 0.0
        %1899 = vmatprep.subr.mxu0 0.0
        %1900 = vmatpush1.msra.mxu0 0.0
        %1901 = vmatprep.subr.mxu0 0.0
        %1902 = vmatpush1.msra.mxu0 0.0
        %1903 = vmatprep.subr.mxu0 0.0
        %1904 = vmatpush1.msra.mxu0 0.0
        %1905 = vmatprep.subr.mxu0 0.0
        %1906 = vmatpush1.msra.mxu0 0.0
        %1907 = vmatprep.mubr.f32.mxu0 0.0
        %1908 = vmatmul.mubr.f32.gmra.mrb[0].mxu0 %v1832
        %v1909 = vpop.f32.mrb[0].mxu0
        %v1910 = vadd.f32 0.0, %v1909
        %v1911 = vpop.f32.mrb[0].mxu0
        %1912 = vmatprep.mubr.f32.mxu0 0.0
        %1913 = vmatmul.mubr.f32.gmra.mrb[0].mxu0 %v1835
        %v1914 = vpop.f32.mrb[0].mxu0
        %v1915 = vadd.f32 0.0, %v1914
        %v1916 = vpop.f32.mrb[0].mxu0
        %1917 = vmatprep.mubr.f32.mxu0 0.0
        %1918 = vmatmul.mubr.f32.gmra.mrb[0].mxu0 %v1838
        %v1919 = vpop.f32.mrb[0].mxu0
        %v1920 = vadd.f32 0.0, %v1919
        %v1921 = vpop.f32.mrb[0].mxu0
        %1922 = vmatprep.mubr.f32.mxu0 0.0
        %1923 = vmatmul.mubr.f32.gmra.mrb[0].mxu0 %v1841
        %v1924 = vpop.f32.mrb[0].mxu0
        %v1925 = vadd.f32 0.0, %v1924
        %v1926 = vpop.f32.mrb[0].mxu0
        %1927 = vdwg.mxu0
        %v1928 = vmax.f32 %v1694, %v1910
        %v1929 = vmax.f32 %v1695, %v1915
        %v1930 = vmax.f32 %v1696, %v1920
        %v1931 = vmax.f32 %v1697, %v1925
        %v1932 = vsub.f32 %v1694, %v1928
        %v1933 = vsub.f32 %v1695, %v1929
        %v1934 = vsub.f32 %v1696, %v1930
        %v1935 = vsub.f32 %v1697, %v1931
        %v1936 = vmul.f32 %v1932, 1.442695
        %v1937 = vpow.pop %v1936
        %v1938 = vmul.f32 %v1933, 1.442695
        %v1939 = vpow.pop %v1938
        %v1940 = vmul.f32 %v1934, 1.442695
        %v1941 = vpow.pop %v1940
        %v1942 = vmul.f32 %v1935, 1.442695
        %v1943 = vpow.pop %v1942
        %v1944 = vsub.f32 %v1910, %v1928
        %v1945 = vsub.f32 %v1915, %v1929
        %v1946 = vsub.f32 %v1920, %v1930
        %v1947 = vsub.f32 %v1925, %v1931
        %v1948 = vmul.f32 %v1944, 1.442695
        %v1949 = vpow.pop %v1948
        %v1950 = vmul.f32 %v1945, 1.442695
        %v1951 = vpow.pop %v1950
        %v1952 = vmul.f32 %v1946, 1.442695
        %v1953 = vpow.pop %v1952
        %v1954 = vmul.f32 %v1947, 1.442695
        %v1955 = vpow.pop %v1954
        %v1956 = vmul.f32 %v1937, %v1726
        %v1957 = vmul.f32 %v1939, %v1727
        %v1958 = vmul.f32 %v1941, %v1728
        %v1959 = vmul.f32 %v1943, %v1729
        %v1960 = vadd.f32 %v1956, %v1949
        %v1961 = vadd.f32 %v1957, %v1951
        %v1962 = vadd.f32 %v1958, %v1953
        %v1963 = vadd.f32 %v1959, %v1955
        %v1964 = vmul.f32 %v1937, %v1754
        %v1965 = vmul.f32 %v1939, %v1755
        %v1966 = vmul.f32 %v1941, %v1756
        %v1967 = vmul.f32 %v1943, %v1757
        %1972 = vrot.lane.b32.xlu0 %v1813, 96
        %v1973 = vpop.permute.xlu0 %1972
        %1974 = vrot.lane.b32.xlu0 %v1816, 96
        %v1975 = vpop.permute.xlu0 %1974
        %1976 = vrot.lane.b32.xlu0 %v1821, 96
        %v1977 = vpop.permute.xlu0 %1976
        %1978 = vrot.lane.b32.xlu0 %v1824, 96
        %v1979 = vpop.permute.xlu0 %1978
        %v1984 = vmul.f32 %v1949, %v1973
        %v1985 = vmul.f32 %v1951, %v1975
        %v1986 = vmul.f32 %v1953, %v1977
        %v1987 = vmul.f32 %v1955, %v1979
        %v1988 = vadd.f32 %v1964, %v1984
        %v1989 = vadd.f32 %v1965, %v1985
        %v1990 = vadd.f32 %v1966, %v1986
        %v1991 = vadd.f32 %v1967, %v1987
        %1992 = vrot.lane.b32.xlu0 %v1770, 64
        %v1993 = vpop.permute.xlu0 %1992
        %1994 = vrot.lane.b32.xlu0 %v1771, 64
        %v1995 = vpop.permute.xlu0 %1994
        %v1997 = vsel %vm445, %v1993, 0
        %v2000 = vsel %vm445, %v1995, 0
        %2002 = vmatprep.subr.bf16.mxu0 0
        %2003 = vmatpush1.bf16.msra.mxu0 %v437
        %2004 = vmatprep.subr.bf16.mxu0 0
        %2005 = vmatpush1.bf16.msra.mxu0 %v438
        %2006 = vmatprep.subr.bf16.mxu0 0
        %2007 = vmatpush1.bf16.msra.mxu0 %v439
        %2008 = vmatprep.subr.bf16.mxu0 0
        %2009 = vmatpush1.bf16.msra.mxu0 %v440
        %2010 = vmatprep.subr.bf16.mxu0 0
        %2011 = vmatpush1.bf16.msra.mxu0 0
        %2012 = vmatprep.subr.bf16.mxu0 0
        %2013 = vmatpush1.bf16.msra.mxu0 0
        %2014 = vmatprep.subr.bf16.mxu0 0
        %2015 = vmatpush1.bf16.msra.mxu0 0
        %2016 = vmatprep.subr.bf16.mxu0 0
        %2017 = vmatpush1.bf16.msra.mxu0 0
        %2018 = vmatprep.subr.bf16.mxu0 0
        %2019 = vmatpush1.bf16.msra.mxu0 0
        %2020 = vmatprep.subr.bf16.mxu0 0
        %2021 = vmatpush1.bf16.msra.mxu0 0
        %2022 = vmatprep.subr.bf16.mxu0 0
        %2023 = vmatpush1.bf16.msra.mxu0 0
        %2024 = vmatprep.subr.bf16.mxu0 0
        %2025 = vmatpush1.bf16.msra.mxu0 0
        %2026 = vmatprep.subr.bf16.mxu0 0
        %2027 = vmatpush1.bf16.msra.mxu0 0
        %2028 = vmatprep.subr.bf16.mxu0 0
        %2029 = vmatpush1.bf16.msra.mxu0 0
        %2030 = vmatprep.subr.bf16.mxu0 0
        %2031 = vmatpush1.bf16.msra.mxu0 0
        %2032 = vmatprep.subr.bf16.mxu0 0
        %2033 = vmatpush1.bf16.msra.mxu0 0
        %2034 = vmatprep.mubr.bf16.mxu0 0
        %2035 = vmatmul.mubr.bf16.gmra.mrb[0].mxu0 %v1997
        %v2036 = vpop.f32.mrb[0].mxu0
        %v2037 = vadd.f32 0.0, %v2036
        %v2038 = vpop.f32.mrb[0].mxu0
        %v2039 = vpop.f32.mrb[0].mxu0
        %v2040 = vadd.f32 0.0, %v2039
        %v2041 = vpop.f32.mrb[0].mxu0
        %2042 = vmatprep.mubr.bf16.mxu0 0
        %2043 = vmatmul.mubr.bf16.gmra.mrb[0].mxu0 %v2000
        %v2044 = vpop.f32.mrb[0].mxu0
        %v2045 = vadd.f32 0.0, %v2044
        %v2046 = vpop.f32.mrb[0].mxu0
        %v2047 = vpop.f32.mrb[0].mxu0
        %v2048 = vadd.f32 0.0, %v2047
        %v2049 = vpop.f32.mrb[0].mxu0
        %2050 = vdwg.mxu0
        %v2051 = vmul.f32 %v385, %v2037
        %v2052 = vmul.f32 %v388, %v2040
        %v2053 = vmul.f32 %v393, %v2045
        %v2054 = vmul.f32 %v396, %v2048
        %v2056 = vsel %vm343, %v2051, 0
        %v2059 = vsel %vm343, %v2052, 0
        %v2062 = vsel %vm343, %v2053, 0
        %v2065 = vsel %vm343, %v2054, 0
        %2067 = vmatprep.subr.mxu0 0.0
        %2068 = vmatpush1.msra.mxu0 %v505
        %2069 = vmatprep.subr.mxu0 0.0
        %2070 = vmatpush1.msra.mxu0 %v506
        %2071 = vmatprep.subr.mxu0 0.0
        %2072 = vmatpush1.msra.mxu0 %v507
        %2073 = vmatprep.subr.mxu0 0.0
        %2074 = vmatpush1.msra.mxu0 %v508
        %2075 = vmatprep.subr.mxu0 0.0
        %2076 = vmatpush1.msra.mxu0 0.0
        %2077 = vmatprep.subr.mxu0 0.0
        %2078 = vmatpush1.msra.mxu0 0.0
        %2079 = vmatprep.subr.mxu0 0.0
        %2080 = vmatpush1.msra.mxu0 0.0
        %2081 = vmatprep.subr.mxu0 0.0
        %2082 = vmatpush1.msra.mxu0 0.0
        %2083 = vmatprep.subr.mxu0 0.0
        %2084 = vmatpush1.msra.mxu0 0.0
        %2085 = vmatprep.subr.mxu0 0.0
        %2086 = vmatpush1.msra.mxu0 0.0
        %2087 = vmatprep.subr.mxu0 0.0
        %2088 = vmatpush1.msra.mxu0 0.0
        %2089 = vmatprep.subr.mxu0 0.0
        %2090 = vmatpush1.msra.mxu0 0.0
        %2091 = vmatprep.subr.mxu0 0.0
        %2092 = vmatpush1.msra.mxu0 0.0
        %2093 = vmatprep.subr.mxu0 0.0
        %2094 = vmatpush1.msra.mxu0 0.0
        %2095 = vmatprep.subr.mxu0 0.0
        %2096 = vmatpush1.msra.mxu0 0.0
        %2097 = vmatprep.subr.mxu0 0.0
        %2098 = vmatpush1.msra.mxu0 0.0
        %2099 = vmatprep.subr.mxu0 0.0
        %2100 = vmatpush1.msra.mxu0 0.0
        %2101 = vmatprep.subr.mxu0 0.0
        %2102 = vmatpush1.msra.mxu0 0.0
        %2103 = vmatprep.subr.mxu0 0.0
        %2104 = vmatpush1.msra.mxu0 0.0
        %2105 = vmatprep.subr.mxu0 0.0
        %2106 = vmatpush1.msra.mxu0 0.0
        %2107 = vmatprep.subr.mxu0 0.0
        %2108 = vmatpush1.msra.mxu0 0.0
        %2109 = vmatprep.subr.mxu0 0.0
        %2110 = vmatpush1.msra.mxu0 0.0
        %2111 = vmatprep.subr.mxu0 0.0
        %2112 = vmatpush1.msra.mxu0 0.0
        %2113 = vmatprep.subr.mxu0 0.0
        %2114 = vmatpush1.msra.mxu0 0.0
        %2115 = vmatprep.subr.mxu0 0.0
        %2116 = vmatpush1.msra.mxu0 0.0
        %2117 = vmatprep.subr.mxu0 0.0
        %2118 = vmatpush1.msra.mxu0 0.0
        %2119 = vmatprep.subr.mxu0 0.0
        %2120 = vmatpush1.msra.mxu0 0.0
        %2121 = vmatprep.subr.mxu0 0.0
        %2122 = vmatpush1.msra.mxu0 0.0
        %2123 = vmatprep.subr.mxu0 0.0
        %2124 = vmatpush1.msra.mxu0 0.0
        %2125 = vmatprep.subr.mxu0 0.0
        %2126 = vmatpush1.msra.mxu0 0.0
        %2127 = vmatprep.subr.mxu0 0.0
        %2128 = vmatpush1.msra.mxu0 0.0
        %2129 = vmatprep.subr.mxu0 0.0
        %2130 = vmatpush1.msra.mxu0 0.0
        %2131 = vmatprep.mubr.f32.mxu0 0.0
        %2132 = vmatmul.mubr.f32.gmra.mrb[0].mxu0 %v2056
        %v2133 = vpop.f32.mrb[0].mxu0
        %v2134 = vadd.f32 0.0, %v2133
        %v2135 = vpop.f32.mrb[0].mxu0
        %2136 = vmatprep.mubr.f32.mxu0 0.0
        %2137 = vmatmul.mubr.f32.gmra.mrb[0].mxu0 %v2059
        %v2138 = vpop.f32.mrb[0].mxu0
        %v2139 = vadd.f32 0.0, %v2138
        %v2140 = vpop.f32.mrb[0].mxu0
        %2141 = vmatprep.mubr.f32.mxu0 0.0
        %2142 = vmatmul.mubr.f32.gmra.mrb[0].mxu0 %v2062
        %v2143 = vpop.f32.mrb[0].mxu0
        %v2144 = vadd.f32 0.0, %v2143
        %v2145 = vpop.f32.mrb[0].mxu0
        %2146 = vmatprep.mubr.f32.mxu0 0.0
        %2147 = vmatmul.mubr.f32.gmra.mrb[0].mxu0 %v2065
        %v2148 = vpop.f32.mrb[0].mxu0
        %v2149 = vadd.f32 0.0, %v2148
        %v2150 = vpop.f32.mrb[0].mxu0
        %2151 = vdwg.mxu0
        %v2152 = vmax.f32 %v1928, %v2134
        %v2153 = vmax.f32 %v1929, %v2139
        %v2154 = vmax.f32 %v1930, %v2144
        %v2155 = vmax.f32 %v1931, %v2149
        %v2156 = vsub.f32 %v1928, %v2152
        %v2157 = vsub.f32 %v1929, %v2153
        %v2158 = vsub.f32 %v1930, %v2154
        %v2159 = vsub.f32 %v1931, %v2155
        %v2160 = vmul.f32 %v2156, 1.442695
        %v2161 = vpow.pop %v2160
        %v2162 = vmul.f32 %v2157, 1.442695
        %v2163 = vpow.pop %v2162
        %v2164 = vmul.f32 %v2158, 1.442695
        %v2165 = vpow.pop %v2164
        %v2166 = vmul.f32 %v2159, 1.442695
        %v2167 = vpow.pop %v2166
        %v2168 = vsub.f32 %v2134, %v2152
        %v2169 = vsub.f32 %v2139, %v2153
        %v2170 = vsub.f32 %v2144, %v2154
        %v2171 = vsub.f32 %v2149, %v2155
        %v2172 = vmul.f32 %v2168, 1.442695
        %v2173 = vpow.pop %v2172
        %v2174 = vmul.f32 %v2169, 1.442695
        %v2175 = vpow.pop %v2174
        %v2176 = vmul.f32 %v2170, 1.442695
        %v2177 = vpow.pop %v2176
        %v2178 = vmul.f32 %v2171, 1.442695
        %v2179 = vpow.pop %v2178
        %v2180 = vmul.f32 %v2161, %v1960
        %v2181 = vmul.f32 %v2163, %v1961
        %v2182 = vmul.f32 %v2165, %v1962
        %v2183 = vmul.f32 %v2167, %v1963
        %v2184 = vadd.f32 %v2180, %v2173
        %v2185 = vadd.f32 %v2181, %v2175
        %v2186 = vadd.f32 %v2182, %v2177
        %v2187 = vadd.f32 %v2183, %v2179
        %v2188 = vmul.f32 %v2161, %v1988
        %v2189 = vmul.f32 %v2163, %v1989
        %v2190 = vmul.f32 %v2165, %v1990
        %v2191 = vmul.f32 %v2167, %v1991
        %2196 = vrot.lane.b32.xlu0 %v2037, 96
        %v2197 = vpop.permute.xlu0 %2196
        %2198 = vrot.lane.b32.xlu0 %v2040, 96
        %v2199 = vpop.permute.xlu0 %2198
        %2200 = vrot.lane.b32.xlu0 %v2045, 96
        %v2201 = vpop.permute.xlu0 %2200
        %2202 = vrot.lane.b32.xlu0 %v2048, 96
        %v2203 = vpop.permute.xlu0 %2202
        %v2208 = vmul.f32 %v2173, %v2197
        %v2209 = vmul.f32 %v2175, %v2199
        %v2210 = vmul.f32 %v2177, %v2201
        %v2211 = vmul.f32 %v2179, %v2203
        %v2212 = vadd.f32 %v2188, %v2208
        %v2213 = vadd.f32 %v2189, %v2209
        %v2214 = vadd.f32 %v2190, %v2210
        %v2215 = vadd.f32 %v2191, %v2211
        %v2216 = vrcp.pop %v2184
        %v2217 = vmul.f32 %v2212, %v2216
        %v2218 = vrcp.pop %v2185
        %v2219 = vmul.f32 %v2213, %v2218
        %v2220 = vrcp.pop %v2186
        %v2221 = vmul.f32 %v2214, %v2220
        %v2222 = vrcp.pop %v2187
        %v2223 = vmul.f32 %v2215, %v2222
        %v2224 = vmax.f32 %v2217, 0.0
        %v2225 = vmax.f32 %v2219, 0.0
        %v2226 = vmax.f32 %v2221, 0.0
        %v2227 = vmax.f32 %v2223, 0.0
        %v2228 = vand.u32 2147483647, %v2217
        %v2229 = vand.u32 2147483647, %v2219
        %v2230 = vand.u32 2147483647, %v2221
        %v2231 = vand.u32 2147483647, %v2223
        %v2232 = vsub.f32 0.0, %v2228
        %v2233 = vsub.f32 0.0, %v2229
        %v2234 = vsub.f32 0.0, %v2230
        %v2235 = vsub.f32 0.0, %v2231
        %v2236 = vmul.f32 %v2232, 1.442695
        %v2237 = vpow.pop %v2236
        %v2238 = vmul.f32 %v2233, 1.442695
        %v2239 = vpow.pop %v2238
        %v2240 = vmul.f32 %v2234, 1.442695
        %v2241 = vpow.pop %v2240
        %v2242 = vmul.f32 %v2235, 1.442695
        %v2243 = vpow.pop %v2242
        %v2244 = vadd.f32 %v2237, 1.0
        %v2245 = vadd.f32 %v2239, 1.0
        %v2246 = vadd.f32 %v2241, 1.0
        %v2247 = vadd.f32 %v2243, 1.0
        %v2248 = vlog2.pop %v2244
        %v2249 = vmul.f32 %v2248, 0.6931472
        %v2250 = vlog2.pop %v2245
        %v2251 = vmul.f32 %v2250, 0.6931472
        %v2252 = vlog2.pop %v2246
        %v2253 = vmul.f32 %v2252, 0.6931472
        %v2254 = vlog2.pop %v2247
        %v2255 = vmul.f32 %v2254, 0.6931472
        %v2256 = vadd.f32 %v2224, %v2249
        %v2257 = vadd.f32 %v2225, %v2251
        %v2258 = vadd.f32 %v2226, %v2253
        %v2259 = vadd.f32 %v2227, %v2255
        %v2260 = vsub.f32 %v2256, 0.6931472
        %v2261 = vsub.f32 %v2257, 0.6931472
        %v2262 = vsub.f32 %v2258, 0.6931472
        %v2263 = vsub.f32 %v2259, 0.6931472
        %v2264 = vpack.c.bf16 %v2261, %v2260
        %v2265 = vpack.c.bf16 %v2263, %v2262
        %v2266 = vld [vmem:[%s5] sm:$0xf]
        %v2267 = vld [vmem:[%s5 + $0x4] sm:$0xf]
        %v2268 = vld [vmem:[%s5 + $0x8] sm:$0xf]
        %v2269 = vld [vmem:[%s5 + $0xc] sm:$0xf]
        %v2274 = vunpack.c.l.b16 %v2266
        %v2275 = vunpack.c.l.b16 %v2267
        %v2276 = vunpack.c.l.b16 %v2268
        %v2277 = vunpack.c.l.b16 %v2269
        %v2278 = vpack.c.b16 %v2275, %v2274
        %v2279 = vpack.c.b16 %v2277, %v2276
        %v2283 = vsel %vm343, %v2264, 0
        %v2286 = vsel %vm343, %v2265, 0
        %2288 = vmatprep.subr.bf16.mxu0 0
        %2289 = vmatpush1.bf16.msra.mxu0 %v2278
        %2290 = vmatprep.subr.bf16.mxu0 0
        %2291 = vmatpush1.bf16.msra.mxu0 %v2279
        %2292 = vmatprep.subr.bf16.mxu0 0
        %2293 = vmatpush1.bf16.msra.mxu0 0
        %2294 = vmatprep.subr.bf16.mxu0 0
        %2295 = vmatpush1.bf16.msra.mxu0 0
        %2296 = vmatprep.subr.bf16.mxu0 0
        %2297 = vmatpush1.bf16.msra.mxu0 0
        %2298 = vmatprep.subr.bf16.mxu0 0
        %2299 = vmatpush1.bf16.msra.mxu0 0
        %2300 = vmatprep.subr.bf16.mxu0 0
        %2301 = vmatpush1.bf16.msra.mxu0 0
        %2302 = vmatprep.subr.bf16.mxu0 0
        %2303 = vmatpush1.bf16.msra.mxu0 0
        %2304 = vmatprep.subr.bf16.mxu0 0
        %2305 = vmatpush1.bf16.msra.mxu0 0
        %2306 = vmatprep.subr.bf16.mxu0 0
        %2307 = vmatpush1.bf16.msra.mxu0 0
        %2308 = vmatprep.subr.bf16.mxu0 0
        %2309 = vmatpush1.bf16.msra.mxu0 0
        %2310 = vmatprep.subr.bf16.mxu0 0
        %2311 = vmatpush1.bf16.msra.mxu0 0
        %2312 = vmatprep.subr.bf16.mxu0 0
        %2313 = vmatpush1.bf16.msra.mxu0 0
        %2314 = vmatprep.subr.bf16.mxu0 0
        %2315 = vmatpush1.bf16.msra.mxu0 0
        %2316 = vmatprep.subr.bf16.mxu0 0
        %2317 = vmatpush1.bf16.msra.mxu0 0
        %2318 = vmatprep.subr.bf16.mxu0 0
        %2319 = vmatpush1.bf16.msra.mxu0 0
        %2320 = vmatprep.mubr.bf16.mxu0 0
        %2321 = vmatmul.mubr.bf16.gmra.mrb[0].mxu0 %v2283
        %v2322 = vpop.f32.mrb[0].mxu0
        %v2323 = vadd.f32 0.0, %v2322
        %v2324 = vpop.f32.mrb[0].mxu0
        %v2325 = vpop.f32.mrb[0].mxu0
        %v2326 = vadd.f32 0.0, %v2325
        %v2327 = vpop.f32.mrb[0].mxu0
        %2328 = vmatprep.mubr.bf16.mxu0 0
        %2329 = vmatmul.mubr.bf16.gmra.mrb[0].mxu0 %v2286
        %v2330 = vpop.f32.mrb[0].mxu0
        %v2331 = vadd.f32 0.0, %v2330
        %v2332 = vpop.f32.mrb[0].mxu0
        %v2333 = vpop.f32.mrb[0].mxu0
        %v2334 = vadd.f32 0.0, %v2333
        %v2335 = vpop.f32.mrb[0].mxu0
        %2336 = vdwg.mxu0
        %2337 = vst.msk [vmem:[%s310] sm:$0xff] %vm343, %v2323
        %2338 = vst.msk [vmem:[%s310 + $0x8] sm:$0xff] %vm343, %v2326
        %2339 = vst.msk [vmem:[%s310 + $0x10] sm:$0xff] %vm343, %v2331
        %2340 = vst.msk [vmem:[%s310 + $0x18] sm:$0xff] %vm343, %v2334
        %s2341 = smul.u32 4, %s21
        %p2342 = scmp.lt.s32.totalorder %s2341, 7
        %s2343 = scalar_select %p2342, %s2341, 7
        %s2344 = smul.addr %s2343, 8
        %s2345 = scalar_lea.vmem %s6, %s2344
        // Predicated region
        $region53: #{tpu_custom_call.1} parent=43 // pred_check
          %p2346 = pneg %p175
        $region54: #{tpu_custom_call.1} parent=43 // pred_check_branch
          %2348 = sbr.rel (%p2346) target = $region56
        $region55: #{tpu_custom_call.1} parent=43 // pred_region
          %s2349 = smul.u32 4, %s21
        $region56: #{tpu_custom_call.1} parent=43 // pred_fallthru
          _
      $region44: #{tpu_custom_call.1} parent=5 // pred_fallthru
        _
      %p2350 = scmp.le.s32.totalorder 2, %s16
      // Predicated region
      $region57: #{tpu_custom_call.1} parent=5 // pred_check
        %p2351 = pneg %p2350
      $region58: #{tpu_custom_call.1} parent=5 // pred_check_branch
        %2353 = sbr.rel (%p2351) target = $region60
      $region59: #{tpu_custom_call.1} parent=5 // pred_region
        %s2354 = ssub.s32 %s16, 2
        // Predicated region
        $region61: #{tpu_custom_call.1} parent=59 // pred_check
          %p2355 = pneg %p181
        $region62: #{tpu_custom_call.1} parent=59 // pred_check_branch
          %2357 = sbr.rel (%p2355) target = $region64
        $region63: #{tpu_custom_call.1} parent=59 // pred_region
          %s2358 = smul.u32 4, %s22
          %p2359 = scmp.lt.s32.totalorder %s2358, 7
          %s2360 = scalar_select %p2359, %s2358, 7
          %s2361 = smul.addr %s2360, 8
          %s2362 = scalar_lea.vmem %s6, %s2361
        $region64: #{tpu_custom_call.1} parent=59 // pred_fallthru
          _
      $region60: #{tpu_custom_call.1} parent=5 // pred_fallthru
        _
    $region6: #{tpu_custom_call.1} parent=1 // loop_footer
      %s20 = sadd.s32 1, %s16
    $region7: #{tpu_custom_call.1} parent=1 // loop_footer_branch
      %15 = sbr.rel target = $region3
    $region8: #{tpu_custom_call.1} parent=1 // loop_exit
      _
    %2363 = vsyncpa [#allocation3], 1
    %s2364 = scalar_lea.sflag [#allocation3], 1
    %2365 = vsyncpa %s2364, 1
    %2366 = vsyncpa [#allocation5], 1

</llo_original>
